<compile_context>
chip_gen: v5e
topology: v5e:2x2
jax: 0.10.0
libtpu: 0.0.40
codegen_flags: <defaults>
</compile_context>

<pallas_src>
import jax
import jax.numpy as jnp
from jax.experimental import pallas as pl
from jax.experimental.pallas import tpu as pltpu

IN_DIM = 4 * 300        # 1200 (four concatenated word2vec-300 vectors)
HID_DIM = 300
DICT_LEN = 256          # synthetic vocab size (dict_len is data-dependent in the original)

# padded (lane/MXU aligned) dims
IN_PAD = 1280           # 1200 -> multiple of 256
HID_PAD = 384           # 300  -> multiple of 128
DICT_PAD = ((DICT_LEN + 127) // 128) * 128   # 256 already aligned


def _round_up(n, m):
    return ((n + m - 1) // m) * m


def mlp_logsoftmax_kernel(x_ref, w1_ref, b1_ref, w2_ref, b2_ref, w3_ref, b3_ref, o_ref):
    # linear1 (bf16 operands, f32 accumulate) + tanh in f32
    h = jnp.dot(x_ref[...], w1_ref[...], preferred_element_type=jnp.float32) + b1_ref[...]
    h = jnp.tanh(h)
    # linear2 + tanh
    h = jnp.dot(h.astype(jnp.bfloat16), w2_ref[...],
                preferred_element_type=jnp.float32) + b2_ref[...]
    h = jnp.tanh(h)
    # linear3
    logits = jnp.dot(h.astype(jnp.bfloat16), w3_ref[...],
                     preferred_element_type=jnp.float32) + b3_ref[...]
    # mask padded vocab columns (static no-op when DICT_PAD == DICT_LEN)
    if DICT_PAD != DICT_LEN:
        col = jax.lax.broadcasted_iota(jnp.int32, logits.shape, 1)
        logits = jnp.where(col < DICT_LEN, logits, -jnp.inf)
    # numerically-stable log-softmax over the last axis (dim=1)
    m = jnp.max(logits, axis=-1, keepdims=True)
    s = logits - m
    lse = jnp.log(jnp.sum(jnp.exp(s), axis=-1, keepdims=True))
    o_ref[...] = s - lse


def model_forward(x, w1, b1, w2, b2, w3, b3):
    """x: [B, 1200] f32; weights stored as [in, out]; biases as [1, out]."""
    B = x.shape[0]

    # choose batch tile: 128 for large batches, small (multiple of 8) otherwise
    tile_b = min(128, _round_up(B, 8))
    b_pad = _round_up(B, tile_b)
    grid = (b_pad // tile_b,)

    # --- wrapper-side padding + bf16 cast of matmul operands ---
    x_p = jnp.pad(x, ((0, b_pad - B), (0, IN_PAD - IN_DIM))).astype(jnp.bfloat16)
    w1_p = jnp.pad(w1, ((0, IN_PAD - IN_DIM), (0, HID_PAD - HID_DIM))).astype(jnp.bfloat16)
    w2_p = jnp.pad(w2, ((0, HID_PAD - HID_DIM), (0, HID_PAD - HID_DIM))).astype(jnp.bfloat16)
    w3_p = jnp.pad(w3, ((0, HID_PAD - HID_DIM), (0, DICT_PAD - DICT_LEN))).astype(jnp.bfloat16)
    b1_p = jnp.pad(b1, ((0, 0), (0, HID_PAD - HID_DIM))).astype(jnp.float32)
    b2_p = jnp.pad(b2, ((0, 0), (0, HID_PAD - HID_DIM))).astype(jnp.float32)
    b3_p = jnp.pad(b3, ((0, 0), (0, DICT_PAD - DICT_LEN))).astype(jnp.float32)

    resident = lambda shape: pl.BlockSpec(shape, lambda i: (0, 0))  # constant block -> stays in VMEM

    out_full = pl.pallas_call(
        mlp_logsoftmax_kernel,
        out_shape=jax.ShapeDtypeStruct((b_pad, DICT_PAD), jnp.float32),
        grid=grid,
        in_specs=[
            pl.BlockSpec((tile_b, IN_PAD), lambda i: (i, 0)),   # x tile (double-buffered)
            resident((IN_PAD, HID_PAD)),  resident((1, HID_PAD)),
            resident((HID_PAD, HID_PAD)), resident((1, HID_PAD)),
            resident((HID_PAD, DICT_PAD)), resident((1, DICT_PAD)),
        ],
        out_specs=pl.BlockSpec((tile_b, DICT_PAD), lambda i: (i, 0)),
        compiler_params=pltpu.CompilerParams(
            dimension_semantics=("parallel",),
        ),
    )(x_p, w1_p, b1_p, w2_p, b2_p, w3_p, b3_p)

    return out_full[:B, :DICT_LEN]


def init_params(key):
    # Deterministic synthetic init mirroring nn.Linear shapes, stored transposed
    # to [in, out] so the kernel computes x @ W + b.
    k1, k2, k3, k4, k5, k6 = jax.random.split(key, 6)
    scale1 = 1.0 / jnp.sqrt(IN_DIM)
    scale2 = 1.0 / jnp.sqrt(HID_DIM)
    w1 = jax.random.uniform(k1, (IN_DIM, HID_DIM), jnp.float32, -scale1, scale1)
    b1 = jax.random.uniform(k2, (1, HID_DIM), jnp.float32, -scale1, scale1)
    w2 = jax.random.uniform(k3, (HID_DIM, HID_DIM), jnp.float32, -scale2, scale2)
    b2 = jax.random.uniform(k4, (1, HID_DIM), jnp.float32, -scale2, scale2)
    w3 = jax.random.uniform(k5, (HID_DIM, DICT_LEN), jnp.float32, -scale2, scale2)
    b3 = jax.random.uniform(k6, (1, DICT_LEN), jnp.float32, -scale2, scale2)
    return w1, b1, w2, b2, w3, b3


def _reference(x, w1, b1, w2, b2, w3, b3):
    h = jnp.tanh(x @ w1 + b1)
    h = jnp.tanh(h @ w2 + b2)
    logits = h @ w3 + b3
    return jax.nn.log_softmax(logits, axis=-1)


if __name__ == "__main__":
    key = jax.random.PRNGKey(0)
    kx, kp = jax.random.split(key)
    B = 8
    x = jax.random.normal(kx, (B, IN_DIM), jnp.float32)
    params = init_params(kp)

    out = model_forward(x, *params)
    out = jax.block_until_ready(out)

    assert out.shape == (B, DICT_LEN)
    # log-softmax rows should exp-sum to ~1
    row_sums = jnp.sum(jnp.exp(out), axis=-1)
    assert bool(jnp.all(jnp.abs(row_sums - 1.0) < 1e-3))
    # loose match vs f32 reference (bf16 matmul operands)
    ref = _reference(x, *params)
    assert bool(jnp.max(jnp.abs(out - ref)) < 0.1)
    print("KERNEL_OK")
</pallas_src>

<mosaic_0001>
module attributes {stable_mosaic.version = 11 : i64} {
  func.func @mlp_logsoftmax_kernel(%arg0: i32, %arg1: memref<8x1280xbf16, #tpu.memory_space<vmem>>, %arg2: memref<1280x384xbf16, #tpu.memory_space<vmem>>, %arg3: memref<1x384xf32, #tpu.memory_space<vmem>>, %arg4: memref<384x384xbf16, #tpu.memory_space<vmem>>, %arg5: memref<1x384xf32, #tpu.memory_space<vmem>>, %arg6: memref<384x256xbf16, #tpu.memory_space<vmem>>, %arg7: memref<1x256xf32, #tpu.memory_space<vmem>>, %arg8: memref<8x256xf32, #tpu.memory_space<vmem>>) attributes {dimension_semantics = [#tpu.dimension_semantics<parallel>], iteration_bounds = array<i64: 1>, scalar_prefetch = 0 : i64, scratch_operands = 0 : i64, tpu.core_type = #tpu.core_type<tc>, window_params = [{transform_indices = @transform_0, window_bounds = array<i64: 8, 1280>}, {pipeline_mode = #tpu.pipeline_mode<synchronous>, transform_indices = @transform_1, window_bounds = array<i64: 1280, 384>}, {pipeline_mode = #tpu.pipeline_mode<synchronous>, transform_indices = @transform_2, window_bounds = array<i64: 1, 384>}, {pipeline_mode = #tpu.pipeline_mode<synchronous>, transform_indices = @transform_3, window_bounds = array<i64: 384, 384>}, {pipeline_mode = #tpu.pipeline_mode<synchronous>, transform_indices = @transform_4, window_bounds = array<i64: 1, 384>}, {pipeline_mode = #tpu.pipeline_mode<synchronous>, transform_indices = @transform_5, window_bounds = array<i64: 384, 256>}, {pipeline_mode = #tpu.pipeline_mode<synchronous>, transform_indices = @transform_6, window_bounds = array<i64: 1, 256>}, {transform_indices = @transform_7, window_bounds = array<i64: 8, 256>}]} {
    %c0 = arith.constant 0 : index
    %c0_0 = arith.constant 0 : index
    %0 = vector.load %arg1[%c0, %c0_0] : memref<8x1280xbf16, #tpu.memory_space<vmem>>, vector<8x1280xbf16>
    %c0_1 = arith.constant 0 : index
    %c0_2 = arith.constant 0 : index
    %1 = vector.load %arg2[%c0_1, %c0_2] : memref<1280x384xbf16, #tpu.memory_space<vmem>>, vector<1280x384xbf16>
    %cst = arith.constant dense<0.000000e+00> : vector<8x384xf32>
    %2 = tpu.matmul %0, %1, %cst {dimension_numbers = #tpu.dot_dimension_numbers<[1], [0], [0], [1], [0, 0, 1, 1], [], []>} : vector<8x1280xbf16>, vector<1280x384xbf16>, vector<8x384xf32> -> vector<8x384xf32>
    %c0_3 = arith.constant 0 : index
    %c0_4 = arith.constant 0 : index
    %3 = vector.load %arg3[%c0_3, %c0_4] : memref<1x384xf32, #tpu.memory_space<vmem>>, vector<1x384xf32>
    %4 = vector.broadcast %3 : vector<1x384xf32> to vector<8x384xf32>
    %5 = arith.addf %2, %4 : vector<8x384xf32>
    %6 = math.tanh %5 : vector<8x384xf32>
    %7 = arith.truncf %6 : vector<8x384xf32> to vector<8x384xbf16>
    %c0_5 = arith.constant 0 : index
    %c0_6 = arith.constant 0 : index
    %8 = vector.load %arg4[%c0_5, %c0_6] : memref<384x384xbf16, #tpu.memory_space<vmem>>, vector<384x384xbf16>
    %cst_7 = arith.constant dense<0.000000e+00> : vector<8x384xf32>
    %9 = tpu.matmul %7, %8, %cst_7 {dimension_numbers = #tpu.dot_dimension_numbers<[1], [0], [0], [1], [0, 0, 1, 1], [], []>} : vector<8x384xbf16>, vector<384x384xbf16>, vector<8x384xf32> -> vector<8x384xf32>
    %c0_8 = arith.constant 0 : index
    %c0_9 = arith.constant 0 : index
    %10 = vector.load %arg5[%c0_8, %c0_9] : memref<1x384xf32, #tpu.memory_space<vmem>>, vector<1x384xf32>
    %11 = vector.broadcast %10 : vector<1x384xf32> to vector<8x384xf32>
    %12 = arith.addf %9, %11 : vector<8x384xf32>
    %13 = math.tanh %12 : vector<8x384xf32>
    %14 = arith.truncf %13 : vector<8x384xf32> to vector<8x384xbf16>
    %c0_10 = arith.constant 0 : index
    %c0_11 = arith.constant 0 : index
    %15 = vector.load %arg6[%c0_10, %c0_11] : memref<384x256xbf16, #tpu.memory_space<vmem>>, vector<384x256xbf16>
    %cst_12 = arith.constant dense<0.000000e+00> : vector<8x256xf32>
    %16 = tpu.matmul %14, %15, %cst_12 {dimension_numbers = #tpu.dot_dimension_numbers<[1], [0], [0], [1], [0, 0, 1, 1], [], []>} : vector<8x384xbf16>, vector<384x256xbf16>, vector<8x256xf32> -> vector<8x256xf32>
    %c0_13 = arith.constant 0 : index
    %c0_14 = arith.constant 0 : index
    %17 = vector.load %arg7[%c0_13, %c0_14] : memref<1x256xf32, #tpu.memory_space<vmem>>, vector<1x256xf32>
    %18 = vector.broadcast %17 : vector<1x256xf32> to vector<8x256xf32>
    %19 = arith.addf %16, %18 : vector<8x256xf32>
    %cst_15 = arith.constant dense<0xFF800000> : vector<8xf32>
    %20 = vector.multi_reduction <maximumf>, %19, %cst_15 [1] : vector<8x256xf32> to vector<8xf32>
    %21 = vector.shape_cast %20 : vector<8xf32> to vector<8x1xf32>
    %22 = vector.broadcast %21 : vector<8x1xf32> to vector<8x256xf32>
    %23 = arith.subf %19, %22 : vector<8x256xf32>
    %24 = math.exp %23 : vector<8x256xf32>
    %cst_16 = arith.constant dense<0.000000e+00> : vector<8xf32>
    %25 = vector.multi_reduction <add>, %24, %cst_16 [1] : vector<8x256xf32> to vector<8xf32>
    %26 = vector.shape_cast %25 : vector<8xf32> to vector<8x1xf32>
    %27 = math.log %26 : vector<8x1xf32>
    %28 = vector.broadcast %27 : vector<8x1xf32> to vector<8x256xf32>
    %29 = arith.subf %23, %28 : vector<8x256xf32>
    %c0_17 = arith.constant 0 : index
    %c0_18 = arith.constant 0 : index
    %30 = vector.load %arg8[%c0_17, %c0_18] : memref<8x256xf32, #tpu.memory_space<vmem>>, vector<8x256xf32>
    tpu.vector_store %arg8[%c0_17, %c0_18], %29 {strides = array<i32>} : memref<8x256xf32, #tpu.memory_space<vmem>>, vector<8x256xf32>,
    return
  }
  func.func @transform_0(%arg0: i32) -> (i32, i32) {
    %c0_i32 = arith.constant 0 : i32
    %c0_i32_0 = arith.constant 0 : i32
    return %arg0, %c0_i32 : i32, i32
  }
  func.func @transform_1(%arg0: i32) -> (i32, i32) {
    %c0_i32 = arith.constant 0 : i32
    %c0_i32_0 = arith.constant 0 : i32
    %c0_i32_1 = arith.constant 0 : i32
    return %c0_i32, %c0_i32_0 : i32, i32
  }
  func.func @transform_2(%arg0: i32) -> (i32, i32) {
    %c0_i32 = arith.constant 0 : i32
    %c0_i32_0 = arith.constant 0 : i32
    %c0_i32_1 = arith.constant 0 : i32
    return %c0_i32, %c0_i32_0 : i32, i32
  }
  func.func @transform_3(%arg0: i32) -> (i32, i32) {
    %c0_i32 = arith.constant 0 : i32
    %c0_i32_0 = arith.constant 0 : i32
    %c0_i32_1 = arith.constant 0 : i32
    return %c0_i32, %c0_i32_0 : i32, i32
  }
  func.func @transform_4(%arg0: i32) -> (i32, i32) {
    %c0_i32 = arith.constant 0 : i32
    %c0_i32_0 = arith.constant 0 : i32
    %c0_i32_1 = arith.constant 0 : i32
    return %c0_i32, %c0_i32_0 : i32, i32
  }
  func.func @transform_5(%arg0: i32) -> (i32, i32) {
    %c0_i32 = arith.constant 0 : i32
    %c0_i32_0 = arith.constant 0 : i32
    %c0_i32_1 = arith.constant 0 : i32
    return %c0_i32, %c0_i32_0 : i32, i32
  }
  func.func @transform_6(%arg0: i32) -> (i32, i32) {
    %c0_i32 = arith.constant 0 : i32
    %c0_i32_0 = arith.constant 0 : i32
    %c0_i32_1 = arith.constant 0 : i32
    return %c0_i32, %c0_i32_0 : i32, i32
  }
  func.func @transform_7(%arg0: i32) -> (i32, i32) {
    %c0_i32 = arith.constant 0 : i32
    %c0_i32_0 = arith.constant 0 : i32
    return %arg0, %c0_i32 : i32, i32
  }
}

</mosaic_0001>

<llo_original>
// kernel: tpu_custom_call.1
$region0: #{tpu_custom_call.1}
  #allocation0 [shape = 'u32[]', space=smem, size = 0x4, offset = 0x4, fixed_abs, tag = 'smem constant byte address 0x4 - core index']
  #allocation1 [shape = 'u32[72,128]{1,0:T(1,128)}', space=vmem, size = 0x9000, scoped, tag = 'internal scratch']
  %s0 = inlined_call_operand.hbm [shape: bf16[8,1280], index: 0, kind: input, shape index: {}]
  %s1 = inlined_call_operand.hbm [shape: bf16[1280,384], index: 1, kind: input, shape index: {}]
  %s2 = inlined_call_operand.hbm [shape: f32[1,384], index: 2, kind: input, shape index: {}]
  %s3 = inlined_call_operand.hbm [shape: bf16[384,384], index: 3, kind: input, shape index: {}]
  %s4 = inlined_call_operand.vmem [shape: f32[1,384], index: 4, kind: input, shape index: {}]
  %s5 = inlined_call_operand.hbm [shape: bf16[384,256], index: 5, kind: input, shape index: {}]
  %s6 = inlined_call_operand.vmem [shape: f32[1,256], index: 6, kind: input, shape index: {}]
  %s7 = inlined_call_operand.hbm [shape: f32[8,256], index: 7, kind: output, shape index: {}]
  %s8 = sld [smem:[#allocation0]]
  $region58: #{tpu_custom_call.1} parent=0
    _
  %s10 = ssub.s32 1, %s8
  %s11 = scalar_select 0, %s10, %s8
  $region1: #{tpu_custom_call.1} parent=0
    #allocation2 [shape = 'u8[20480]{0}', space=vmem, size = 0x5000, scoped, tag = 'input window, operand 0, single buffered']
    #allocation3 [shape = 's32[1]{0}', space=sflag, size = 0x4, scoped, tag = 'scoped memory for tpu_custom_call.1']
    #allocation4 [shape = 's32[1]{0}', space=sflag, size = 0x4, scoped, tag = 'scoped memory for tpu_custom_call.1']
    #allocation5 [shape = 'u8[983040]{0}', space=vmem, size = 0xf0000, scoped, tag = 'input window, operand 1, single buffered']
    #allocation6 [shape = 's32[1]{0}', space=sflag, size = 0x4, scoped, tag = 'scoped memory for tpu_custom_call.1']
    #allocation7 [shape = 'u8[1536]{0}', space=vmem, size = 0x800, scoped, tag = 'input window, operand 2, single buffered']
    #allocation8 [shape = 'u8[294912]{0}', space=vmem, size = 0x48000, scoped, tag = 'input window, operand 3, single buffered']
    #allocation9 [shape = 's32[1]{0}', space=sflag, size = 0x4, scoped, tag = 'scoped memory for tpu_custom_call.1']
    #allocation10 [shape = 'u8[196608]{0}', space=vmem, size = 0x30000, scoped, tag = 'input window, operand 5, single buffered']
    #allocation11 [shape = 'u8[8192]{0}', space=vmem, size = 0x2000, scoped, tag = 'output window, operand 0, single buffered']
    %12 = vsyncpa [#allocation3], 0
    %13 = vsyncpa [#allocation6], 0
    %14 = vsyncpa [#allocation9], 0
    %15 = vsyncpa [#allocation4], 0
    // Predicated region
    $region2: #{tpu_custom_call.1} parent=1 // pred_check
      _
    $region3: #{tpu_custom_call.1} parent=1 // pred_check_branch
      %17 = sbr.rel (0) target = $region5
    $region4: #{tpu_custom_call.1} parent=1 // pred_region
      %19 = vsyncadd [#allocation3], 0
      %s21 = sshll.u32 %s0, 4
      %s22 = int_to_ptr.hbm [resolvable:$true] %s21
      %s23 = sshll.u32 [#allocation2], 4
      %s24 = int_to_ptr.vmem [resolvable:$true] %s23
      %26 = dma.hbm_to_vmem [thread:$0]  %s22, 640, %s24, [#allocation3]
    $region5: #{tpu_custom_call.1} parent=1 // pred_fallthru
      _
    // Predicated region
    $region6: #{tpu_custom_call.1} parent=1 // pred_check
      _
    $region7: #{tpu_custom_call.1} parent=1 // pred_check_branch
      %28 = sbr.rel (0) target = $region9
    $region8: #{tpu_custom_call.1} parent=1 // pred_region
      %30 = vsyncadd [#allocation6], 0
      %s31 = sshll.u32 %s1, 4
      %s32 = int_to_ptr.hbm [resolvable:$true] %s31
      %s33 = sshll.u32 [#allocation5], 4
      %s34 = int_to_ptr.vmem [resolvable:$true] %s33
      %39 = dma.hbm_to_vmem [thread:$0]  %s32, 30720, %s34, [#allocation6], 192, 192, 12
    $region9: #{tpu_custom_call.1} parent=1 // pred_fallthru
      _
    // Predicated region
    $region10: #{tpu_custom_call.1} parent=1 // pred_check
      _
    $region11: #{tpu_custom_call.1} parent=1 // pred_check_branch
      %41 = sbr.rel (0) target = $region13
    $region12: #{tpu_custom_call.1} parent=1 // pred_region
      %43 = vsyncadd [#allocation6], 0
      %s45 = sshll.u32 %s2, 4
      %s46 = int_to_ptr.hbm [resolvable:$true] %s45
      %s47 = sshll.u32 [#allocation7], 4
      %s48 = int_to_ptr.vmem [resolvable:$true] %s47
      %50 = dma.hbm_to_vmem [thread:$0]  %s46, 48, %s48, [#allocation6]
    $region13: #{tpu_custom_call.1} parent=1 // pred_fallthru
      _
    // Predicated region
    $region14: #{tpu_custom_call.1} parent=1 // pred_check
      _
    $region15: #{tpu_custom_call.1} parent=1 // pred_check_branch
      %52 = sbr.rel (0) target = $region17
    $region16: #{tpu_custom_call.1} parent=1 // pred_region
      %54 = vsyncadd [#allocation9], 0
      %s55 = sshll.u32 %s3, 4
      %s56 = int_to_ptr.hbm [resolvable:$true] %s55
      %s57 = sshll.u32 [#allocation8], 4
      %s58 = int_to_ptr.vmem [resolvable:$true] %s57
      %63 = dma.hbm_to_vmem [thread:$0]  %s56, 9216, %s58, [#allocation9], 192, 192, 12
    $region17: #{tpu_custom_call.1} parent=1 // pred_fallthru
      _
    // Predicated region
    $region18: #{tpu_custom_call.1} parent=1 // pred_check
      _
    $region19: #{tpu_custom_call.1} parent=1 // pred_check_branch
      %65 = sbr.rel (0) target = $region21
    $region20: #{tpu_custom_call.1} parent=1 // pred_region
      _
    $region21: #{tpu_custom_call.1} parent=1 // pred_fallthru
      _
    // Predicated region
    $region22: #{tpu_custom_call.1} parent=1 // pred_check
      _
    $region23: #{tpu_custom_call.1} parent=1 // pred_check_branch
      %67 = sbr.rel (0) target = $region25
    $region24: #{tpu_custom_call.1} parent=1 // pred_region
      %69 = vsyncadd [#allocation9], 0
      %s70 = sshll.u32 %s5, 4
      %s71 = int_to_ptr.hbm [resolvable:$true] %s70
      %s72 = sshll.u32 [#allocation10], 4
      %s73 = int_to_ptr.vmem [resolvable:$true] %s72
      %78 = dma.hbm_to_vmem [thread:$0]  %s71, 6144, %s73, [#allocation9], 128, 128, 8
    $region25: #{tpu_custom_call.1} parent=1 // pred_fallthru
      _
    // Predicated region
    $region26: #{tpu_custom_call.1} parent=1 // pred_check
      _
    $region27: #{tpu_custom_call.1} parent=1 // pred_check_branch
      %80 = sbr.rel (0) target = $region29
    $region28: #{tpu_custom_call.1} parent=1 // pred_region
      _
    $region29: #{tpu_custom_call.1} parent=1 // pred_fallthru
      _
    // Predicated region
    $region30: #{tpu_custom_call.1} parent=1 // pred_check
      _
    $region31: #{tpu_custom_call.1} parent=1 // pred_check_branch
      %82 = sbr.rel (0) target = $region33
    $region32: #{tpu_custom_call.1} parent=1 // pred_region
      %84 = dma.done [#allocation3], 640
    $region33: #{tpu_custom_call.1} parent=1 // pred_fallthru
      _
    // Predicated region
    $region34: #{tpu_custom_call.1} parent=1 // pred_check
      _
    $region35: #{tpu_custom_call.1} parent=1 // pred_check_branch
      %86 = sbr.rel (0) target = $region37
    $region36: #{tpu_custom_call.1} parent=1 // pred_region
      %88 = dma.done [#allocation6], 30720
    $region37: #{tpu_custom_call.1} parent=1 // pred_fallthru
      _
    // Predicated region
    $region38: #{tpu_custom_call.1} parent=1 // pred_check
      _
    $region39: #{tpu_custom_call.1} parent=1 // pred_check_branch
      %90 = sbr.rel (0) target = $region41
    $region40: #{tpu_custom_call.1} parent=1 // pred_region
      %92 = dma.done [#allocation6], 48
    $region41: #{tpu_custom_call.1} parent=1 // pred_fallthru
      _
    // Predicated region
    $region42: #{tpu_custom_call.1} parent=1 // pred_check
      _
    $region43: #{tpu_custom_call.1} parent=1 // pred_check_branch
      %94 = sbr.rel (0) target = $region45
    $region44: #{tpu_custom_call.1} parent=1 // pred_region
      %96 = dma.done [#allocation9], 9216
    $region45: #{tpu_custom_call.1} parent=1 // pred_fallthru
      _
    // Predicated region
    $region46: #{tpu_custom_call.1} parent=1 // pred_check
      _
    $region47: #{tpu_custom_call.1} parent=1 // pred_check_branch
      %98 = sbr.rel (0) target = $region49
    $region48: #{tpu_custom_call.1} parent=1 // pred_region
      %100 = dma.done [#allocation9], 6144
    $region49: #{tpu_custom_call.1} parent=1 // pred_fallthru
      _
    %v101 = vld [vmem:[#allocation2] sm:$0xff]
    %v102 = vld [vmem:[#allocation2 + $0x8] sm:$0xff]
    %v103 = vld [vmem:[#allocation2 + $0x10] sm:$0xff]
    %v104 = vld [vmem:[#allocation2 + $0x18] sm:$0xff]
    %v105 = vld [vmem:[#allocation2 + $0x20] sm:$0xff]
    %v106 = vld [vmem:[#allocation5] sm:$0xff]
    %v107 = vld [vmem:[#allocation5 + $0x8] sm:$0xf]
    %v108 = vld [vmem:[#allocation5 + $0xc] sm:$0xff]
    %v109 = vld [vmem:[#allocation5 + $0x14] sm:$0xf]
    %v110 = vld [vmem:[#allocation5 + $0x18] sm:$0xff]
    %v111 = vld [vmem:[#allocation5 + $0x20] sm:$0xf]
    %v112 = vld [vmem:[#allocation5 + $0x24] sm:$0xff]
    %v113 = vld [vmem:[#allocation5 + $0x2c] sm:$0xf]
    %v114 = vld [vmem:[#allocation5 + $0x30] sm:$0xff]
    %v115 = vld [vmem:[#allocation5 + $0x38] sm:$0xf]
    %v116 = vld [vmem:[#allocation5 + $0x3c] sm:$0xff]
    %v117 = vld [vmem:[#allocation5 + $0x44] sm:$0xf]
    %v118 = vld [vmem:[#allocation5 + $0x48] sm:$0xff]
    %v119 = vld [vmem:[#allocation5 + $0x50] sm:$0xf]
    %v120 = vld [vmem:[#allocation5 + $0x54] sm:$0xff]
    %v121 = vld [vmem:[#allocation5 + $0x5c] sm:$0xf]
    %v122 = vld [vmem:[#allocation5 + $0x60] sm:$0xff]
    %v123 = vld [vmem:[#allocation5 + $0x68] sm:$0xf]
    %v124 = vld [vmem:[#allocation5 + $0x6c] sm:$0xff]
    %v125 = vld [vmem:[#allocation5 + $0x74] sm:$0xf]
    %v126 = vld [vmem:[#allocation5 + $0x78] sm:$0xff]
    %v127 = vld [vmem:[#allocation5 + $0x80] sm:$0xf]
    %v128 = vld [vmem:[#allocation5 + $0x84] sm:$0xff]
    %v129 = vld [vmem:[#allocation5 + $0x8c] sm:$0xf]
    %v130 = vld [vmem:[#allocation5 + $0x90] sm:$0xff]
    %v131 = vld [vmem:[#allocation5 + $0x98] sm:$0xf]
    %v132 = vld [vmem:[#allocation5 + $0x9c] sm:$0xff]
    %v133 = vld [vmem:[#allocation5 + $0xa4] sm:$0xf]
    %v134 = vld [vmem:[#allocation5 + $0xa8] sm:$0xff]
    %v135 = vld [vmem:[#allocation5 + $0xb0] sm:$0xf]
    %v136 = vld [vmem:[#allocation5 + $0xb4] sm:$0xff]
    %v137 = vld [vmem:[#allocation5 + $0xbc] sm:$0xf]
    %v138 = vld [vmem:[#allocation5 + $0xc0] sm:$0xff]
    %v139 = vld [vmem:[#allocation5 + $0xc8] sm:$0xf]
    %v140 = vld [vmem:[#allocation5 + $0xcc] sm:$0xff]
    %v141 = vld [vmem:[#allocation5 + $0xd4] sm:$0xf]
    %v142 = vld [vmem:[#allocation5 + $0xd8] sm:$0xff]
    %v143 = vld [vmem:[#allocation5 + $0xe0] sm:$0xf]
    %v144 = vld [vmem:[#allocation5 + $0xe4] sm:$0xff]
    %v145 = vld [vmem:[#allocation5 + $0xec] sm:$0xf]
    %v146 = vld [vmem:[#allocation5 + $0xf0] sm:$0xff]
    %v147 = vld [vmem:[#allocation5 + $0xf8] sm:$0xf]
    %v148 = vld [vmem:[#allocation5 + $0xfc] sm:$0xff]
    %v149 = vld [vmem:[#allocation5 + $0x104] sm:$0xf]
    %v150 = vld [vmem:[#allocation5 + $0x108] sm:$0xff]
    %v151 = vld [vmem:[#allocation5 + $0x110] sm:$0xf]
    %v152 = vld [vmem:[#allocation5 + $0x114] sm:$0xff]
    %v153 = vld [vmem:[#allocation5 + $0x11c] sm:$0xf]
    %v154 = vld [vmem:[#allocation5 + $0x120] sm:$0xff]
    %v155 = vld [vmem:[#allocation5 + $0x128] sm:$0xf]
    %v156 = vld [vmem:[#allocation5 + $0x12c] sm:$0xff]
    %v157 = vld [vmem:[#allocation5 + $0x134] sm:$0xf]
    %v158 = vld [vmem:[#allocation5 + $0x138] sm:$0xff]
    %v159 = vld [vmem:[#allocation5 + $0x140] sm:$0xf]
    %v160 = vld [vmem:[#allocation5 + $0x144] sm:$0xff]
    %v161 = vld [vmem:[#allocation5 + $0x14c] sm:$0xf]
    %v162 = vld [vmem:[#allocation5 + $0x150] sm:$0xff]
    %v163 = vld [vmem:[#allocation5 + $0x158] sm:$0xf]
    %v164 = vld [vmem:[#allocation5 + $0x15c] sm:$0xff]
    %v165 = vld [vmem:[#allocation5 + $0x164] sm:$0xf]
    %v166 = vld [vmem:[#allocation5 + $0x168] sm:$0xff]
    %v167 = vld [vmem:[#allocation5 + $0x170] sm:$0xf]
    %v168 = vld [vmem:[#allocation5 + $0x174] sm:$0xff]
    %v169 = vld [vmem:[#allocation5 + $0x17c] sm:$0xf]
    %v170 = vld [vmem:[#allocation5 + $0x180] sm:$0xff]
    %v171 = vld [vmem:[#allocation5 + $0x188] sm:$0xf]
    %v172 = vld [vmem:[#allocation5 + $0x18c] sm:$0xff]
    %v173 = vld [vmem:[#allocation5 + $0x194] sm:$0xf]
    %v174 = vld [vmem:[#allocation5 + $0x198] sm:$0xff]
    %v175 = vld [vmem:[#allocation5 + $0x1a0] sm:$0xf]
    %v176 = vld [vmem:[#allocation5 + $0x1a4] sm:$0xff]
    %v177 = vld [vmem:[#allocation5 + $0x1ac] sm:$0xf]
    %v178 = vld [vmem:[#allocation5 + $0x1b0] sm:$0xff]
    %v179 = vld [vmem:[#allocation5 + $0x1b8] sm:$0xf]
    %v180 = vld [vmem:[#allocation5 + $0x1bc] sm:$0xff]
    %v181 = vld [vmem:[#allocation5 + $0x1c4] sm:$0xf]
    %v182 = vld [vmem:[#allocation5 + $0x1c8] sm:$0xff]
    %v183 = vld [vmem:[#allocation5 + $0x1d0] sm:$0xf]
    %v184 = vld [vmem:[#allocation5 + $0x1d4] sm:$0xff]
    %v185 = vld [vmem:[#allocation5 + $0x1dc] sm:$0xf]
    %v186 = vld [vmem:[#allocation5 + $0x1e0] sm:$0xff]
    %v187 = vld [vmem:[#allocation5 + $0x1e8] sm:$0xf]
    %v188 = vld [vmem:[#allocation5 + $0x1ec] sm:$0xff]
    %v189 = vld [vmem:[#allocation5 + $0x1f4] sm:$0xf]
    %v190 = vld [vmem:[#allocation5 + $0x1f8] sm:$0xff]
    %v191 = vld [vmem:[#allocation5 + $0x200] sm:$0xf]
    %v192 = vld [vmem:[#allocation5 + $0x204] sm:$0xff]
    %v193 = vld [vmem:[#allocation5 + $0x20c] sm:$0xf]
    %v194 = vld [vmem:[#allocation5 + $0x210] sm:$0xff]
    %v195 = vld [vmem:[#allocation5 + $0x218] sm:$0xf]
    %v196 = vld [vmem:[#allocation5 + $0x21c] sm:$0xff]
    %v197 = vld [vmem:[#allocation5 + $0x224] sm:$0xf]
    %v198 = vld [vmem:[#allocation5 + $0x228] sm:$0xff]
    %v199 = vld [vmem:[#allocation5 + $0x230] sm:$0xf]
    %v200 = vld [vmem:[#allocation5 + $0x234] sm:$0xff]
    %v201 = vld [vmem:[#allocation5 + $0x23c] sm:$0xf]
    %v202 = vld [vmem:[#allocation5 + $0x240] sm:$0xff]
    %v203 = vld [vmem:[#allocation5 + $0x248] sm:$0xf]
    %v204 = vld [vmem:[#allocation5 + $0x24c] sm:$0xff]
    %v205 = vld [vmem:[#allocation5 + $0x254] sm:$0xf]
    %v206 = vld [vmem:[#allocation5 + $0x258] sm:$0xff]
    %v207 = vld [vmem:[#allocation5 + $0x260] sm:$0xf]
    %v208 = vld [vmem:[#allocation5 + $0x264] sm:$0xff]
    %v209 = vld [vmem:[#allocation5 + $0x26c] sm:$0xf]
    %v210 = vld [vmem:[#allocation5 + $0x270] sm:$0xff]
    %v211 = vld [vmem:[#allocation5 + $0x278] sm:$0xf]
    %v212 = vld [vmem:[#allocation5 + $0x27c] sm:$0xff]
    %v213 = vld [vmem:[#allocation5 + $0x284] sm:$0xf]
    %v214 = vld [vmem:[#allocation5 + $0x288] sm:$0xff]
    %v215 = vld [vmem:[#allocation5 + $0x290] sm:$0xf]
    %v216 = vld [vmem:[#allocation5 + $0x294] sm:$0xff]
    %v217 = vld [vmem:[#allocation5 + $0x29c] sm:$0xf]
    %v218 = vld [vmem:[#allocation5 + $0x2a0] sm:$0xff]
    %v219 = vld [vmem:[#allocation5 + $0x2a8] sm:$0xf]
    %v220 = vld [vmem:[#allocation5 + $0x2ac] sm:$0xff]
    %v221 = vld [vmem:[#allocation5 + $0x2b4] sm:$0xf]
    %v222 = vld [vmem:[#allocation5 + $0x2b8] sm:$0xff]
    %v223 = vld [vmem:[#allocation5 + $0x2c0] sm:$0xf]
    %v224 = vld [vmem:[#allocation5 + $0x2c4] sm:$0xff]
    %v225 = vld [vmem:[#allocation5 + $0x2cc] sm:$0xf]
    %v226 = vld [vmem:[#allocation5 + $0x2d0] sm:$0xff]
    %v227 = vld [vmem:[#allocation5 + $0x2d8] sm:$0xf]
    %v228 = vld [vmem:[#allocation5 + $0x2dc] sm:$0xff]
    %v229 = vld [vmem:[#allocation5 + $0x2e4] sm:$0xf]
    %v230 = vld [vmem:[#allocation5 + $0x2e8] sm:$0xff]
    %v231 = vld [vmem:[#allocation5 + $0x2f0] sm:$0xf]
    %v232 = vld [vmem:[#allocation5 + $0x2f4] sm:$0xff]
    %v233 = vld [vmem:[#allocation5 + $0x2fc] sm:$0xf]
    %v234 = vld [vmem:[#allocation5 + $0x300] sm:$0xff]
    %v235 = vld [vmem:[#allocation5 + $0x308] sm:$0xf]
    %v236 = vld [vmem:[#allocation5 + $0x30c] sm:$0xff]
    %v237 = vld [vmem:[#allocation5 + $0x314] sm:$0xf]
    %v238 = vld [vmem:[#allocation5 + $0x318] sm:$0xff]
    %v239 = vld [vmem:[#allocation5 + $0x320] sm:$0xf]
    %v240 = vld [vmem:[#allocation5 + $0x324] sm:$0xff]
    %v241 = vld [vmem:[#allocation5 + $0x32c] sm:$0xf]
    %v242 = vld [vmem:[#allocation5 + $0x330] sm:$0xff]
    %v243 = vld [vmem:[#allocation5 + $0x338] sm:$0xf]
    %v244 = vld [vmem:[#allocation5 + $0x33c] sm:$0xff]
    %v245 = vld [vmem:[#allocation5 + $0x344] sm:$0xf]
    %v246 = vld [vmem:[#allocation5 + $0x348] sm:$0xff]
    %v247 = vld [vmem:[#allocation5 + $0x350] sm:$0xf]
    %v248 = vld [vmem:[#allocation5 + $0x354] sm:$0xff]
    %v249 = vld [vmem:[#allocation5 + $0x35c] sm:$0xf]
    %v250 = vld [vmem:[#allocation5 + $0x360] sm:$0xff]
    %v251 = vld [vmem:[#allocation5 + $0x368] sm:$0xf]
    %v252 = vld [vmem:[#allocation5 + $0x36c] sm:$0xff]
    %v253 = vld [vmem:[#allocation5 + $0x374] sm:$0xf]
    %v254 = vld [vmem:[#allocation5 + $0x378] sm:$0xff]
    %v255 = vld [vmem:[#allocation5 + $0x380] sm:$0xf]
    %v256 = vld [vmem:[#allocation5 + $0x384] sm:$0xff]
    %v257 = vld [vmem:[#allocation5 + $0x38c] sm:$0xf]
    %v258 = vld [vmem:[#allocation5 + $0x390] sm:$0xff]
    %v259 = vld [vmem:[#allocation5 + $0x398] sm:$0xf]
    %v260 = vld [vmem:[#allocation5 + $0x39c] sm:$0xff]
    %v261 = vld [vmem:[#allocation5 + $0x3a4] sm:$0xf]
    %v262 = vld [vmem:[#allocation5 + $0x3a8] sm:$0xff]
    %v263 = vld [vmem:[#allocation5 + $0x3b0] sm:$0xf]
    %v264 = vld [vmem:[#allocation5 + $0x3b4] sm:$0xff]
    %v265 = vld [vmem:[#allocation5 + $0x3bc] sm:$0xf]
    %v266 = vld [vmem:[#allocation5 + $0x3c0] sm:$0xff]
    %v267 = vld [vmem:[#allocation5 + $0x3c8] sm:$0xf]
    %v268 = vld [vmem:[#allocation5 + $0x3cc] sm:$0xff]
    %v269 = vld [vmem:[#allocation5 + $0x3d4] sm:$0xf]
    %v270 = vld [vmem:[#allocation5 + $0x3d8] sm:$0xff]
    %v271 = vld [vmem:[#allocation5 + $0x3e0] sm:$0xf]
    %v272 = vld [vmem:[#allocation5 + $0x3e4] sm:$0xff]
    %v273 = vld [vmem:[#allocation5 + $0x3ec] sm:$0xf]
    %v274 = vld [vmem:[#allocation5 + $0x3f0] sm:$0xff]
    %v275 = vld [vmem:[#allocation5 + $0x3f8] sm:$0xf]
    %v276 = vld [vmem:[#allocation5 + $0x3fc] sm:$0xff]
    %v277 = vld [vmem:[#allocation5 + $0x404] sm:$0xf]
    %v278 = vld [vmem:[#allocation5 + $0x408] sm:$0xff]
    %v279 = vld [vmem:[#allocation5 + $0x410] sm:$0xf]
    %v280 = vld [vmem:[#allocation5 + $0x414] sm:$0xff]
    %v281 = vld [vmem:[#allocation5 + $0x41c] sm:$0xf]
    %v282 = vld [vmem:[#allocation5 + $0x420] sm:$0xff]
    %v283 = vld [vmem:[#allocation5 + $0x428] sm:$0xf]
    %v284 = vld [vmem:[#allocation5 + $0x42c] sm:$0xff]
    %v285 = vld [vmem:[#allocation5 + $0x434] sm:$0xf]
    %v286 = vld [vmem:[#allocation5 + $0x438] sm:$0xff]
    %v287 = vld [vmem:[#allocation5 + $0x440] sm:$0xf]
    %v288 = vld [vmem:[#allocation5 + $0x444] sm:$0xff]
    %v289 = vld [vmem:[#allocation5 + $0x44c] sm:$0xf]
    %v290 = vld [vmem:[#allocation5 + $0x450] sm:$0xff]
    %v291 = vld [vmem:[#allocation5 + $0x458] sm:$0xf]
    %v292 = vld [vmem:[#allocation5 + $0x45c] sm:$0xff]
    %v293 = vld [vmem:[#allocation5 + $0x464] sm:$0xf]
    %v294 = vld [vmem:[#allocation5 + $0x468] sm:$0xff]
    %v295 = vld [vmem:[#allocation5 + $0x470] sm:$0xf]
    %v296 = vld [vmem:[#allocation5 + $0x474] sm:$0xff]
    %v297 = vld [vmem:[#allocation5 + $0x47c] sm:$0xf]
    %v298 = vld [vmem:[#allocation5 + $0x480] sm:$0xff]
    %v299 = vld [vmem:[#allocation5 + $0x488] sm:$0xf]
    %v300 = vld [vmem:[#allocation5 + $0x48c] sm:$0xff]
    %v301 = vld [vmem:[#allocation5 + $0x494] sm:$0xf]
    %v302 = vld [vmem:[#allocation5 + $0x498] sm:$0xff]
    %v303 = vld [vmem:[#allocation5 + $0x4a0] sm:$0xf]
    %v304 = vld [vmem:[#allocation5 + $0x4a4] sm:$0xff]
    %v305 = vld [vmem:[#allocation5 + $0x4ac] sm:$0xf]
    %v306 = vld [vmem:[#allocation5 + $0x4b0] sm:$0xff]
    %v307 = vld [vmem:[#allocation5 + $0x4b8] sm:$0xf]
    %v308 = vld [vmem:[#allocation5 + $0x4bc] sm:$0xff]
    %v309 = vld [vmem:[#allocation5 + $0x4c4] sm:$0xf]
    %v310 = vld [vmem:[#allocation5 + $0x4c8] sm:$0xff]
    %v311 = vld [vmem:[#allocation5 + $0x4d0] sm:$0xf]
    %v312 = vld [vmem:[#allocation5 + $0x4d4] sm:$0xff]
    %v313 = vld [vmem:[#allocation5 + $0x4dc] sm:$0xf]
    %v314 = vld [vmem:[#allocation5 + $0x4e0] sm:$0xff]
    %v315 = vld [vmem:[#allocation5 + $0x4e8] sm:$0xf]
    %v316 = vld [vmem:[#allocation5 + $0x4ec] sm:$0xff]
    %v317 = vld [vmem:[#allocation5 + $0x4f4] sm:$0xf]
    %v318 = vld [vmem:[#allocation5 + $0x4f8] sm:$0xff]
    %v319 = vld [vmem:[#allocation5 + $0x500] sm:$0xf]
    %v320 = vld [vmem:[#allocation5 + $0x504] sm:$0xff]
    %v321 = vld [vmem:[#allocation5 + $0x50c] sm:$0xf]
    %v322 = vld [vmem:[#allocation5 + $0x510] sm:$0xff]
    %v323 = vld [vmem:[#allocation5 + $0x518] sm:$0xf]
    %v324 = vld [vmem:[#allocation5 + $0x51c] sm:$0xff]
    %v325 = vld [vmem:[#allocation5 + $0x524] sm:$0xf]
    %v326 = vld [vmem:[#allocation5 + $0x528] sm:$0xff]
    %v327 = vld [vmem:[#allocation5 + $0x530] sm:$0xf]
    %v328 = vld [vmem:[#allocation5 + $0x534] sm:$0xff]
    %v329 = vld [vmem:[#allocation5 + $0x53c] sm:$0xf]
    %v330 = vld [vmem:[#allocation5 + $0x540] sm:$0xff]
    %v331 = vld [vmem:[#allocation5 + $0x548] sm:$0xf]
    %v332 = vld [vmem:[#allocation5 + $0x54c] sm:$0xff]
    %v333 = vld [vmem:[#allocation5 + $0x554] sm:$0xf]
    %v334 = vld [vmem:[#allocation5 + $0x558] sm:$0xff]
    %v335 = vld [vmem:[#allocation5 + $0x560] sm:$0xf]
    %v336 = vld [vmem:[#allocation5 + $0x564] sm:$0xff]
    %v337 = vld [vmem:[#allocation5 + $0x56c] sm:$0xf]
    %v338 = vld [vmem:[#allocation5 + $0x570] sm:$0xff]
    %v339 = vld [vmem:[#allocation5 + $0x578] sm:$0xf]
    %v340 = vld [vmem:[#allocation5 + $0x57c] sm:$0xff]
    %v341 = vld [vmem:[#allocation5 + $0x584] sm:$0xf]
    %v342 = vld [vmem:[#allocation5 + $0x588] sm:$0xff]
    %v343 = vld [vmem:[#allocation5 + $0x590] sm:$0xf]
    %v344 = vld [vmem:[#allocation5 + $0x594] sm:$0xff]
    %v345 = vld [vmem:[#allocation5 + $0x59c] sm:$0xf]
    %v346 = vld [vmem:[#allocation5 + $0x5a0] sm:$0xff]
    %v347 = vld [vmem:[#allocation5 + $0x5a8] sm:$0xf]
    %v348 = vld [vmem:[#allocation5 + $0x5ac] sm:$0xff]
    %v349 = vld [vmem:[#allocation5 + $0x5b4] sm:$0xf]
    %v350 = vld [vmem:[#allocation5 + $0x5b8] sm:$0xff]
    %v351 = vld [vmem:[#allocation5 + $0x5c0] sm:$0xf]
    %v352 = vld [vmem:[#allocation5 + $0x5c4] sm:$0xff]
    %v353 = vld [vmem:[#allocation5 + $0x5cc] sm:$0xf]
    %v354 = vld [vmem:[#allocation5 + $0x5d0] sm:$0xff]
    %v355 = vld [vmem:[#allocation5 + $0x5d8] sm:$0xf]
    %v356 = vld [vmem:[#allocation5 + $0x5dc] sm:$0xff]
    %v357 = vld [vmem:[#allocation5 + $0x5e4] sm:$0xf]
    %v358 = vld [vmem:[#allocation5 + $0x5e8] sm:$0xff]
    %v359 = vld [vmem:[#allocation5 + $0x5f0] sm:$0xf]
    %v360 = vld [vmem:[#allocation5 + $0x5f4] sm:$0xff]
    %v361 = vld [vmem:[#allocation5 + $0x5fc] sm:$0xf]
    %v362 = vld [vmem:[#allocation5 + $0x600] sm:$0xff]
    %v363 = vld [vmem:[#allocation5 + $0x608] sm:$0xf]
    %v364 = vld [vmem:[#allocation5 + $0x60c] sm:$0xff]
    %v365 = vld [vmem:[#allocation5 + $0x614] sm:$0xf]
    %v366 = vld [vmem:[#allocation5 + $0x618] sm:$0xff]
    %v367 = vld [vmem:[#allocation5 + $0x620] sm:$0xf]
    %v368 = vld [vmem:[#allocation5 + $0x624] sm:$0xff]
    %v369 = vld [vmem:[#allocation5 + $0x62c] sm:$0xf]
    %v370 = vld [vmem:[#allocation5 + $0x630] sm:$0xff]
    %v371 = vld [vmem:[#allocation5 + $0x638] sm:$0xf]
    %v372 = vld [vmem:[#allocation5 + $0x63c] sm:$0xff]
    %v373 = vld [vmem:[#allocation5 + $0x644] sm:$0xf]
    %v374 = vld [vmem:[#allocation5 + $0x648] sm:$0xff]
    %v375 = vld [vmem:[#allocation5 + $0x650] sm:$0xf]
    %v376 = vld [vmem:[#allocation5 + $0x654] sm:$0xff]
    %v377 = vld [vmem:[#allocation5 + $0x65c] sm:$0xf]
    %v378 = vld [vmem:[#allocation5 + $0x660] sm:$0xff]
    %v379 = vld [vmem:[#allocation5 + $0x668] sm:$0xf]
    %v380 = vld [vmem:[#allocation5 + $0x66c] sm:$0xff]
    %v381 = vld [vmem:[#allocation5 + $0x674] sm:$0xf]
    %v382 = vld [vmem:[#allocation5 + $0x678] sm:$0xff]
    %v383 = vld [vmem:[#allocation5 + $0x680] sm:$0xf]
    %v384 = vld [vmem:[#allocation5 + $0x684] sm:$0xff]
    %v385 = vld [vmem:[#allocation5 + $0x68c] sm:$0xf]
    %v386 = vld [vmem:[#allocation5 + $0x690] sm:$0xff]
    %v387 = vld [vmem:[#allocation5 + $0x698] sm:$0xf]
    %v388 = vld [vmem:[#allocation5 + $0x69c] sm:$0xff]
    %v389 = vld [vmem:[#allocation5 + $0x6a4] sm:$0xf]
    %v390 = vld [vmem:[#allocation5 + $0x6a8] sm:$0xff]
    %v391 = vld [vmem:[#allocation5 + $0x6b0] sm:$0xf]
    %v392 = vld [vmem:[#allocation5 + $0x6b4] sm:$0xff]
    %v393 = vld [vmem:[#allocation5 + $0x6bc] sm:$0xf]
    %v394 = vld [vmem:[#allocation5 + $0x6c0] sm:$0xff]
    %v395 = vld [vmem:[#allocation5 + $0x6c8] sm:$0xf]
    %v396 = vld [vmem:[#allocation5 + $0x6cc] sm:$0xff]
    %v397 = vld [vmem:[#allocation5 + $0x6d4] sm:$0xf]
    %v398 = vld [vmem:[#allocation5 + $0x6d8] sm:$0xff]
    %v399 = vld [vmem:[#allocation5 + $0x6e0] sm:$0xf]
    %v400 = vld [vmem:[#allocation5 + $0x6e4] sm:$0xff]
    %v401 = vld [vmem:[#allocation5 + $0x6ec] sm:$0xf]
    %v402 = vld [vmem:[#allocation5 + $0x6f0] sm:$0xff]
    %v403 = vld [vmem:[#allocation5 + $0x6f8] sm:$0xf]
    %v404 = vld [vmem:[#allocation5 + $0x6fc] sm:$0xff]
    %v405 = vld [vmem:[#allocation5 + $0x704] sm:$0xf]
    %v406 = vld [vmem:[#allocation5 + $0x708] sm:$0xff]
    %v407 = vld [vmem:[#allocation5 + $0x710] sm:$0xf]
    %v408 = vld [vmem:[#allocation5 + $0x714] sm:$0xff]
    %v409 = vld [vmem:[#allocation5 + $0x71c] sm:$0xf]
    %v410 = vld [vmem:[#allocation5 + $0x720] sm:$0xff]
    %v411 = vld [vmem:[#allocation5 + $0x728] sm:$0xf]
    %v412 = vld [vmem:[#allocation5 + $0x72c] sm:$0xff]
    %v413 = vld [vmem:[#allocation5 + $0x734] sm:$0xf]
    %v414 = vld [vmem:[#allocation5 + $0x738] sm:$0xff]
    %v415 = vld [vmem:[#allocation5 + $0x740] sm:$0xf]
    %v416 = vld [vmem:[#allocation5 + $0x744] sm:$0xff]
    %v417 = vld [vmem:[#allocation5 + $0x74c] sm:$0xf]
    %v418 = vld [vmem:[#allocation5 + $0x750] sm:$0xff]
    %v419 = vld [vmem:[#allocation5 + $0x758] sm:$0xf]
    %v420 = vld [vmem:[#allocation5 + $0x75c] sm:$0xff]
    %v421 = vld [vmem:[#allocation5 + $0x764] sm:$0xf]
    %v422 = vld [vmem:[#allocation5 + $0x768] sm:$0xff]
    %v423 = vld [vmem:[#allocation5 + $0x770] sm:$0xf]
    %v424 = vld [vmem:[#allocation5 + $0x774] sm:$0xff]
    %v425 = vld [vmem:[#allocation5 + $0x77c] sm:$0xf]
    %v426 = vld [vmem:[#allocation7] sm:$0x7]
    %v428 = vperm.slane %v426, 0
    %v429 = vperm.slane %v426, 1
    %v430 = vperm.slane %v426, 2
    %v439 = vunpack.c.l.b16 %v101
    %v440 = vunpack.c.h.b16 %v101
    %v441 = vunpack.c.l.b16 %v102
    %v442 = vunpack.c.h.b16 %v102
    %v443 = vunpack.c.l.b16 %v103
    %v444 = vunpack.c.h.b16 %v103
    %v445 = vunpack.c.l.b16 %v104
    %v446 = vunpack.c.h.b16 %v104
    %v447 = vunpack.c.l.b16 %v105
    %v448 = vunpack.c.h.b16 %v105
    %v449 = vpack.c.b16 %v439, %v439
    %v450 = vpack.c.b16 %v440, %v440
    %v451 = vpack.c.b16 %v441, %v441
    %v452 = vpack.c.b16 %v442, %v442
    %v453 = vpack.c.b16 %v443, %v443
    %v454 = vpack.c.b16 %v444, %v444
    %v455 = vpack.c.b16 %v445, %v445
    %v456 = vpack.c.b16 %v446, %v446
    %v457 = vpack.c.b16 %v447, %v447
    %v458 = vpack.c.b16 %v448, %v448
    %v789 = vunpack.c.l.b16 %v106
    %v790 = vunpack.c.h.b16 %v106
    %v791 = vunpack.c.l.b16 %v107
    %v792 = vunpack.c.l.b16 %v108
    %v793 = vunpack.c.h.b16 %v108
    %v794 = vunpack.c.l.b16 %v109
    %v795 = vunpack.c.l.b16 %v110
    %v796 = vunpack.c.h.b16 %v110
    %v797 = vunpack.c.l.b16 %v111
    %v798 = vunpack.c.l.b16 %v112
    %v799 = vunpack.c.h.b16 %v112
    %v800 = vunpack.c.l.b16 %v113
    %v801 = vunpack.c.l.b16 %v114
    %v802 = vunpack.c.h.b16 %v114
    %v803 = vunpack.c.l.b16 %v115
    %v804 = vunpack.c.l.b16 %v116
    %v805 = vunpack.c.h.b16 %v116
    %v806 = vunpack.c.l.b16 %v117
    %v807 = vunpack.c.l.b16 %v118
    %v808 = vunpack.c.h.b16 %v118
    %v809 = vunpack.c.l.b16 %v119
    %v810 = vunpack.c.l.b16 %v120
    %v811 = vunpack.c.h.b16 %v120
    %v812 = vunpack.c.l.b16 %v121
    %v813 = vunpack.c.l.b16 %v122
    %v814 = vunpack.c.h.b16 %v122
    %v815 = vunpack.c.l.b16 %v123
    %v816 = vunpack.c.l.b16 %v124
    %v817 = vunpack.c.h.b16 %v124
    %v818 = vunpack.c.l.b16 %v125
    %v819 = vunpack.c.l.b16 %v126
    %v820 = vunpack.c.h.b16 %v126
    %v821 = vunpack.c.l.b16 %v127
    %v822 = vunpack.c.l.b16 %v128
    %v823 = vunpack.c.h.b16 %v128
    %v824 = vunpack.c.l.b16 %v129
    %v825 = vunpack.c.l.b16 %v130
    %v826 = vunpack.c.h.b16 %v130
    %v827 = vunpack.c.l.b16 %v131
    %v828 = vunpack.c.l.b16 %v132
    %v829 = vunpack.c.h.b16 %v132
    %v830 = vunpack.c.l.b16 %v133
    %v831 = vunpack.c.l.b16 %v134
    %v832 = vunpack.c.h.b16 %v134
    %v833 = vunpack.c.l.b16 %v135
    %v834 = vunpack.c.l.b16 %v136
    %v835 = vunpack.c.h.b16 %v136
    %v836 = vunpack.c.l.b16 %v137
    %v837 = vunpack.c.l.b16 %v138
    %v838 = vunpack.c.h.b16 %v138
    %v839 = vunpack.c.l.b16 %v139
    %v840 = vunpack.c.l.b16 %v140
    %v841 = vunpack.c.h.b16 %v140
    %v842 = vunpack.c.l.b16 %v141
    %v843 = vunpack.c.l.b16 %v142
    %v844 = vunpack.c.h.b16 %v142
    %v845 = vunpack.c.l.b16 %v143
    %v846 = vunpack.c.l.b16 %v144
    %v847 = vunpack.c.h.b16 %v144
    %v848 = vunpack.c.l.b16 %v145
    %v849 = vunpack.c.l.b16 %v146
    %v850 = vunpack.c.h.b16 %v146
    %v851 = vunpack.c.l.b16 %v147
    %v852 = vunpack.c.l.b16 %v148
    %v853 = vunpack.c.h.b16 %v148
    %v854 = vunpack.c.l.b16 %v149
    %v855 = vunpack.c.l.b16 %v150
    %v856 = vunpack.c.h.b16 %v150
    %v857 = vunpack.c.l.b16 %v151
    %v858 = vunpack.c.l.b16 %v152
    %v859 = vunpack.c.h.b16 %v152
    %v860 = vunpack.c.l.b16 %v153
    %v861 = vunpack.c.l.b16 %v154
    %v862 = vunpack.c.h.b16 %v154
    %v863 = vunpack.c.l.b16 %v155
    %v864 = vunpack.c.l.b16 %v156
    %v865 = vunpack.c.h.b16 %v156
    %v866 = vunpack.c.l.b16 %v157
    %v867 = vunpack.c.l.b16 %v158
    %v868 = vunpack.c.h.b16 %v158
    %v869 = vunpack.c.l.b16 %v159
    %v870 = vunpack.c.l.b16 %v160
    %v871 = vunpack.c.h.b16 %v160
    %v872 = vunpack.c.l.b16 %v161
    %v873 = vunpack.c.l.b16 %v162
    %v874 = vunpack.c.h.b16 %v162
    %v875 = vunpack.c.l.b16 %v163
    %v876 = vunpack.c.l.b16 %v164
    %v877 = vunpack.c.h.b16 %v164
    %v878 = vunpack.c.l.b16 %v165
    %v879 = vunpack.c.l.b16 %v166
    %v880 = vunpack.c.h.b16 %v166
    %v881 = vunpack.c.l.b16 %v167
    %v882 = vunpack.c.l.b16 %v168
    %v883 = vunpack.c.h.b16 %v168
    %v884 = vunpack.c.l.b16 %v169
    %v885 = vunpack.c.l.b16 %v170
    %v886 = vunpack.c.h.b16 %v170
    %v887 = vunpack.c.l.b16 %v171
    %v888 = vunpack.c.l.b16 %v172
    %v889 = vunpack.c.h.b16 %v172
    %v890 = vunpack.c.l.b16 %v173
    %v891 = vunpack.c.l.b16 %v174
    %v892 = vunpack.c.h.b16 %v174
    %v893 = vunpack.c.l.b16 %v175
    %v894 = vunpack.c.l.b16 %v176
    %v895 = vunpack.c.h.b16 %v176
    %v896 = vunpack.c.l.b16 %v177
    %v897 = vunpack.c.l.b16 %v178
    %v898 = vunpack.c.h.b16 %v178
    %v899 = vunpack.c.l.b16 %v179
    %v900 = vunpack.c.l.b16 %v180
    %v901 = vunpack.c.h.b16 %v180
    %v902 = vunpack.c.l.b16 %v181
    %v903 = vunpack.c.l.b16 %v182
    %v904 = vunpack.c.h.b16 %v182
    %v905 = vunpack.c.l.b16 %v183
    %v906 = vunpack.c.l.b16 %v184
    %v907 = vunpack.c.h.b16 %v184
    %v908 = vunpack.c.l.b16 %v185
    %v909 = vunpack.c.l.b16 %v186
    %v910 = vunpack.c.h.b16 %v186
    %v911 = vunpack.c.l.b16 %v187
    %v912 = vunpack.c.l.b16 %v188
    %v913 = vunpack.c.h.b16 %v188
    %v914 = vunpack.c.l.b16 %v189
    %v915 = vunpack.c.l.b16 %v190
    %v916 = vunpack.c.h.b16 %v190
    %v917 = vunpack.c.l.b16 %v191
    %v918 = vunpack.c.l.b16 %v192
    %v919 = vunpack.c.h.b16 %v192
    %v920 = vunpack.c.l.b16 %v193
    %v921 = vunpack.c.l.b16 %v194
    %v922 = vunpack.c.h.b16 %v194
    %v923 = vunpack.c.l.b16 %v195
    %v924 = vunpack.c.l.b16 %v196
    %v925 = vunpack.c.h.b16 %v196
    %v926 = vunpack.c.l.b16 %v197
    %v927 = vunpack.c.l.b16 %v198
    %v928 = vunpack.c.h.b16 %v198
    %v929 = vunpack.c.l.b16 %v199
    %v930 = vunpack.c.l.b16 %v200
    %v931 = vunpack.c.h.b16 %v200
    %v932 = vunpack.c.l.b16 %v201
    %v933 = vunpack.c.l.b16 %v202
    %v934 = vunpack.c.h.b16 %v202
    %v935 = vunpack.c.l.b16 %v203
    %v936 = vunpack.c.l.b16 %v204
    %v937 = vunpack.c.h.b16 %v204
    %v938 = vunpack.c.l.b16 %v205
    %v939 = vunpack.c.l.b16 %v206
    %v940 = vunpack.c.h.b16 %v206
    %v941 = vunpack.c.l.b16 %v207
    %v942 = vunpack.c.l.b16 %v208
    %v943 = vunpack.c.h.b16 %v208
    %v944 = vunpack.c.l.b16 %v209
    %v945 = vunpack.c.l.b16 %v210
    %v946 = vunpack.c.h.b16 %v210
    %v947 = vunpack.c.l.b16 %v211
    %v948 = vunpack.c.l.b16 %v212
    %v949 = vunpack.c.h.b16 %v212
    %v950 = vunpack.c.l.b16 %v213
    %v951 = vunpack.c.l.b16 %v214
    %v952 = vunpack.c.h.b16 %v214
    %v953 = vunpack.c.l.b16 %v215
    %v954 = vunpack.c.l.b16 %v216
    %v955 = vunpack.c.h.b16 %v216
    %v956 = vunpack.c.l.b16 %v217
    %v957 = vunpack.c.l.b16 %v218
    %v958 = vunpack.c.h.b16 %v218
    %v959 = vunpack.c.l.b16 %v219
    %v960 = vunpack.c.l.b16 %v220
    %v961 = vunpack.c.h.b16 %v220
    %v962 = vunpack.c.l.b16 %v221
    %v963 = vunpack.c.l.b16 %v222
    %v964 = vunpack.c.h.b16 %v222
    %v965 = vunpack.c.l.b16 %v223
    %v966 = vunpack.c.l.b16 %v224
    %v967 = vunpack.c.h.b16 %v224
    %v968 = vunpack.c.l.b16 %v225
    %v969 = vunpack.c.l.b16 %v226
    %v970 = vunpack.c.h.b16 %v226
    %v971 = vunpack.c.l.b16 %v227
    %v972 = vunpack.c.l.b16 %v228
    %v973 = vunpack.c.h.b16 %v228
    %v974 = vunpack.c.l.b16 %v229
    %v975 = vunpack.c.l.b16 %v230
    %v976 = vunpack.c.h.b16 %v230
    %v977 = vunpack.c.l.b16 %v231
    %v978 = vunpack.c.l.b16 %v232
    %v979 = vunpack.c.h.b16 %v232
    %v980 = vunpack.c.l.b16 %v233
    %v981 = vunpack.c.l.b16 %v234
    %v982 = vunpack.c.h.b16 %v234
    %v983 = vunpack.c.l.b16 %v235
    %v984 = vunpack.c.l.b16 %v236
    %v985 = vunpack.c.h.b16 %v236
    %v986 = vunpack.c.l.b16 %v237
    %v987 = vunpack.c.l.b16 %v238
    %v988 = vunpack.c.h.b16 %v238
    %v989 = vunpack.c.l.b16 %v239
    %v990 = vunpack.c.l.b16 %v240
    %v991 = vunpack.c.h.b16 %v240
    %v992 = vunpack.c.l.b16 %v241
    %v993 = vunpack.c.l.b16 %v242
    %v994 = vunpack.c.h.b16 %v242
    %v995 = vunpack.c.l.b16 %v243
    %v996 = vunpack.c.l.b16 %v244
    %v997 = vunpack.c.h.b16 %v244
    %v998 = vunpack.c.l.b16 %v245
    %v999 = vunpack.c.l.b16 %v246
    %v1000 = vunpack.c.h.b16 %v246
    %v1001 = vunpack.c.l.b16 %v247
    %v1002 = vunpack.c.l.b16 %v248
    %v1003 = vunpack.c.h.b16 %v248
    %v1004 = vunpack.c.l.b16 %v249
    %v1005 = vunpack.c.l.b16 %v250
    %v1006 = vunpack.c.h.b16 %v250
    %v1007 = vunpack.c.l.b16 %v251
    %v1008 = vunpack.c.l.b16 %v252
    %v1009 = vunpack.c.h.b16 %v252
    %v1010 = vunpack.c.l.b16 %v253
    %v1011 = vunpack.c.l.b16 %v254
    %v1012 = vunpack.c.h.b16 %v254
    %v1013 = vunpack.c.l.b16 %v255
    %v1014 = vunpack.c.l.b16 %v256
    %v1015 = vunpack.c.h.b16 %v256
    %v1016 = vunpack.c.l.b16 %v257
    %v1017 = vunpack.c.l.b16 %v258
    %v1018 = vunpack.c.h.b16 %v258
    %v1019 = vunpack.c.l.b16 %v259
    %v1020 = vunpack.c.l.b16 %v260
    %v1021 = vunpack.c.h.b16 %v260
    %v1022 = vunpack.c.l.b16 %v261
    %v1023 = vunpack.c.l.b16 %v262
    %v1024 = vunpack.c.h.b16 %v262
    %v1025 = vunpack.c.l.b16 %v263
    %v1026 = vunpack.c.l.b16 %v264
    %v1027 = vunpack.c.h.b16 %v264
    %v1028 = vunpack.c.l.b16 %v265
    %v1029 = vunpack.c.l.b16 %v266
    %v1030 = vunpack.c.h.b16 %v266
    %v1031 = vunpack.c.l.b16 %v267
    %v1032 = vunpack.c.l.b16 %v268
    %v1033 = vunpack.c.h.b16 %v268
    %v1034 = vunpack.c.l.b16 %v269
    %v1035 = vunpack.c.l.b16 %v270
    %v1036 = vunpack.c.h.b16 %v270
    %v1037 = vunpack.c.l.b16 %v271
    %v1038 = vunpack.c.l.b16 %v272
    %v1039 = vunpack.c.h.b16 %v272
    %v1040 = vunpack.c.l.b16 %v273
    %v1041 = vunpack.c.l.b16 %v274
    %v1042 = vunpack.c.h.b16 %v274
    %v1043 = vunpack.c.l.b16 %v275
    %v1044 = vunpack.c.l.b16 %v276
    %v1045 = vunpack.c.h.b16 %v276
    %v1046 = vunpack.c.l.b16 %v277
    %v1047 = vunpack.c.l.b16 %v278
    %v1048 = vunpack.c.h.b16 %v278
    %v1049 = vunpack.c.l.b16 %v279
    %v1050 = vunpack.c.l.b16 %v280
    %v1051 = vunpack.c.h.b16 %v280
    %v1052 = vunpack.c.l.b16 %v281
    %v1053 = vunpack.c.l.b16 %v282
    %v1054 = vunpack.c.h.b16 %v282
    %v1055 = vunpack.c.l.b16 %v283
    %v1056 = vunpack.c.l.b16 %v284
    %v1057 = vunpack.c.h.b16 %v284
    %v1058 = vunpack.c.l.b16 %v285
    %v1059 = vunpack.c.l.b16 %v286
    %v1060 = vunpack.c.h.b16 %v286
    %v1061 = vunpack.c.l.b16 %v287
    %v1062 = vunpack.c.l.b16 %v288
    %v1063 = vunpack.c.h.b16 %v288
    %v1064 = vunpack.c.l.b16 %v289
    %v1065 = vunpack.c.l.b16 %v290
    %v1066 = vunpack.c.h.b16 %v290
    %v1067 = vunpack.c.l.b16 %v291
    %v1068 = vunpack.c.l.b16 %v292
    %v1069 = vunpack.c.h.b16 %v292
    %v1070 = vunpack.c.l.b16 %v293
    %v1071 = vunpack.c.l.b16 %v294
    %v1072 = vunpack.c.h.b16 %v294
    %v1073 = vunpack.c.l.b16 %v295
    %v1074 = vunpack.c.l.b16 %v296
    %v1075 = vunpack.c.h.b16 %v296
    %v1076 = vunpack.c.l.b16 %v297
    %v1077 = vunpack.c.l.b16 %v298
    %v1078 = vunpack.c.h.b16 %v298
    %v1079 = vunpack.c.l.b16 %v299
    %v1080 = vunpack.c.l.b16 %v300
    %v1081 = vunpack.c.h.b16 %v300
    %v1082 = vunpack.c.l.b16 %v301
    %v1083 = vunpack.c.l.b16 %v302
    %v1084 = vunpack.c.h.b16 %v302
    %v1085 = vunpack.c.l.b16 %v303
    %v1086 = vunpack.c.l.b16 %v304
    %v1087 = vunpack.c.h.b16 %v304
    %v1088 = vunpack.c.l.b16 %v305
    %v1089 = vunpack.c.l.b16 %v306
    %v1090 = vunpack.c.h.b16 %v306
    %v1091 = vunpack.c.l.b16 %v307
    %v1092 = vunpack.c.l.b16 %v308
    %v1093 = vunpack.c.h.b16 %v308
    %v1094 = vunpack.c.l.b16 %v309
    %v1095 = vunpack.c.l.b16 %v310
    %v1096 = vunpack.c.h.b16 %v310
    %v1097 = vunpack.c.l.b16 %v311
    %v1098 = vunpack.c.l.b16 %v312
    %v1099 = vunpack.c.h.b16 %v312
    %v1100 = vunpack.c.l.b16 %v313
    %v1101 = vunpack.c.l.b16 %v314
    %v1102 = vunpack.c.h.b16 %v314
    %v1103 = vunpack.c.l.b16 %v315
    %v1104 = vunpack.c.l.b16 %v316
    %v1105 = vunpack.c.h.b16 %v316
    %v1106 = vunpack.c.l.b16 %v317
    %v1107 = vunpack.c.l.b16 %v318
    %v1108 = vunpack.c.h.b16 %v318
    %v1109 = vunpack.c.l.b16 %v319
    %v1110 = vunpack.c.l.b16 %v320
    %v1111 = vunpack.c.h.b16 %v320
    %v1112 = vunpack.c.l.b16 %v321
    %v1113 = vunpack.c.l.b16 %v322
    %v1114 = vunpack.c.h.b16 %v322
    %v1115 = vunpack.c.l.b16 %v323
    %v1116 = vunpack.c.l.b16 %v324
    %v1117 = vunpack.c.h.b16 %v324
    %v1118 = vunpack.c.l.b16 %v325
    %v1119 = vunpack.c.l.b16 %v326
    %v1120 = vunpack.c.h.b16 %v326
    %v1121 = vunpack.c.l.b16 %v327
    %v1122 = vunpack.c.l.b16 %v328
    %v1123 = vunpack.c.h.b16 %v328
    %v1124 = vunpack.c.l.b16 %v329
    %v1125 = vunpack.c.l.b16 %v330
    %v1126 = vunpack.c.h.b16 %v330
    %v1127 = vunpack.c.l.b16 %v331
    %v1128 = vunpack.c.l.b16 %v332
    %v1129 = vunpack.c.h.b16 %v332
    %v1130 = vunpack.c.l.b16 %v333
    %v1131 = vunpack.c.l.b16 %v334
    %v1132 = vunpack.c.h.b16 %v334
    %v1133 = vunpack.c.l.b16 %v335
    %v1134 = vunpack.c.l.b16 %v336
    %v1135 = vunpack.c.h.b16 %v336
    %v1136 = vunpack.c.l.b16 %v337
    %v1137 = vunpack.c.l.b16 %v338
    %v1138 = vunpack.c.h.b16 %v338
    %v1139 = vunpack.c.l.b16 %v339
    %v1140 = vunpack.c.l.b16 %v340
    %v1141 = vunpack.c.h.b16 %v340
    %v1142 = vunpack.c.l.b16 %v341
    %v1143 = vunpack.c.l.b16 %v342
    %v1144 = vunpack.c.h.b16 %v342
    %v1145 = vunpack.c.l.b16 %v343
    %v1146 = vunpack.c.l.b16 %v344
    %v1147 = vunpack.c.h.b16 %v344
    %v1148 = vunpack.c.l.b16 %v345
    %v1149 = vunpack.c.l.b16 %v346
    %v1150 = vunpack.c.h.b16 %v346
    %v1151 = vunpack.c.l.b16 %v347
    %v1152 = vunpack.c.l.b16 %v348
    %v1153 = vunpack.c.h.b16 %v348
    %v1154 = vunpack.c.l.b16 %v349
    %v1155 = vunpack.c.l.b16 %v350
    %v1156 = vunpack.c.h.b16 %v350
    %v1157 = vunpack.c.l.b16 %v351
    %v1158 = vunpack.c.l.b16 %v352
    %v1159 = vunpack.c.h.b16 %v352
    %v1160 = vunpack.c.l.b16 %v353
    %v1161 = vunpack.c.l.b16 %v354
    %v1162 = vunpack.c.h.b16 %v354
    %v1163 = vunpack.c.l.b16 %v355
    %v1164 = vunpack.c.l.b16 %v356
    %v1165 = vunpack.c.h.b16 %v356
    %v1166 = vunpack.c.l.b16 %v357
    %v1167 = vunpack.c.l.b16 %v358
    %v1168 = vunpack.c.h.b16 %v358
    %v1169 = vunpack.c.l.b16 %v359
    %v1170 = vunpack.c.l.b16 %v360
    %v1171 = vunpack.c.h.b16 %v360
    %v1172 = vunpack.c.l.b16 %v361
    %v1173 = vunpack.c.l.b16 %v362
    %v1174 = vunpack.c.h.b16 %v362
    %v1175 = vunpack.c.l.b16 %v363
    %v1176 = vunpack.c.l.b16 %v364
    %v1177 = vunpack.c.h.b16 %v364
    %v1178 = vunpack.c.l.b16 %v365
    %v1179 = vunpack.c.l.b16 %v366
    %v1180 = vunpack.c.h.b16 %v366
    %v1181 = vunpack.c.l.b16 %v367
    %v1182 = vunpack.c.l.b16 %v368
    %v1183 = vunpack.c.h.b16 %v368
    %v1184 = vunpack.c.l.b16 %v369
    %v1185 = vunpack.c.l.b16 %v370
    %v1186 = vunpack.c.h.b16 %v370
    %v1187 = vunpack.c.l.b16 %v371
    %v1188 = vunpack.c.l.b16 %v372
    %v1189 = vunpack.c.h.b16 %v372
    %v1190 = vunpack.c.l.b16 %v373
    %v1191 = vunpack.c.l.b16 %v374
    %v1192 = vunpack.c.h.b16 %v374
    %v1193 = vunpack.c.l.b16 %v375
    %v1194 = vunpack.c.l.b16 %v376
    %v1195 = vunpack.c.h.b16 %v376
    %v1196 = vunpack.c.l.b16 %v377
    %v1197 = vunpack.c.l.b16 %v378
    %v1198 = vunpack.c.h.b16 %v378
    %v1199 = vunpack.c.l.b16 %v379
    %v1200 = vunpack.c.l.b16 %v380
    %v1201 = vunpack.c.h.b16 %v380
    %v1202 = vunpack.c.l.b16 %v381
    %v1203 = vunpack.c.l.b16 %v382
    %v1204 = vunpack.c.h.b16 %v382
    %v1205 = vunpack.c.l.b16 %v383
    %v1206 = vunpack.c.l.b16 %v384
    %v1207 = vunpack.c.h.b16 %v384
    %v1208 = vunpack.c.l.b16 %v385
    %v1209 = vunpack.c.l.b16 %v386
    %v1210 = vunpack.c.h.b16 %v386
    %v1211 = vunpack.c.l.b16 %v387
    %v1212 = vunpack.c.l.b16 %v388
    %v1213 = vunpack.c.h.b16 %v388
    %v1214 = vunpack.c.l.b16 %v389
    %v1215 = vunpack.c.l.b16 %v390
    %v1216 = vunpack.c.h.b16 %v390
    %v1217 = vunpack.c.l.b16 %v391
    %v1218 = vunpack.c.l.b16 %v392
    %v1219 = vunpack.c.h.b16 %v392
    %v1220 = vunpack.c.l.b16 %v393
    %v1221 = vunpack.c.l.b16 %v394
    %v1222 = vunpack.c.h.b16 %v394
    %v1223 = vunpack.c.l.b16 %v395
    %v1224 = vunpack.c.l.b16 %v396
    %v1225 = vunpack.c.h.b16 %v396
    %v1226 = vunpack.c.l.b16 %v397
    %v1227 = vunpack.c.l.b16 %v398
    %v1228 = vunpack.c.h.b16 %v398
    %v1229 = vunpack.c.l.b16 %v399
    %v1230 = vunpack.c.l.b16 %v400
    %v1231 = vunpack.c.h.b16 %v400
    %v1232 = vunpack.c.l.b16 %v401
    %v1233 = vunpack.c.l.b16 %v402
    %v1234 = vunpack.c.h.b16 %v402
    %v1235 = vunpack.c.l.b16 %v403
    %v1236 = vunpack.c.l.b16 %v404
    %v1237 = vunpack.c.h.b16 %v404
    %v1238 = vunpack.c.l.b16 %v405
    %v1239 = vunpack.c.l.b16 %v406
    %v1240 = vunpack.c.h.b16 %v406
    %v1241 = vunpack.c.l.b16 %v407
    %v1242 = vunpack.c.l.b16 %v408
    %v1243 = vunpack.c.h.b16 %v408
    %v1244 = vunpack.c.l.b16 %v409
    %v1245 = vunpack.c.l.b16 %v410
    %v1246 = vunpack.c.h.b16 %v410
    %v1247 = vunpack.c.l.b16 %v411
    %v1248 = vunpack.c.l.b16 %v412
    %v1249 = vunpack.c.h.b16 %v412
    %v1250 = vunpack.c.l.b16 %v413
    %v1251 = vunpack.c.l.b16 %v414
    %v1252 = vunpack.c.h.b16 %v414
    %v1253 = vunpack.c.l.b16 %v415
    %v1254 = vunpack.c.l.b16 %v416
    %v1255 = vunpack.c.h.b16 %v416
    %v1256 = vunpack.c.l.b16 %v417
    %v1257 = vunpack.c.l.b16 %v418
    %v1258 = vunpack.c.h.b16 %v418
    %v1259 = vunpack.c.l.b16 %v419
    %v1260 = vunpack.c.l.b16 %v420
    %v1261 = vunpack.c.h.b16 %v420
    %v1262 = vunpack.c.l.b16 %v421
    %v1263 = vunpack.c.l.b16 %v422
    %v1264 = vunpack.c.h.b16 %v422
    %v1265 = vunpack.c.l.b16 %v423
    %v1266 = vunpack.c.l.b16 %v424
    %v1267 = vunpack.c.h.b16 %v424
    %v1268 = vunpack.c.l.b16 %v425
    %v1269 = vpack.c.b16 %v792, %v789
    %v1270 = vpack.c.b16 %v793, %v790
    %v1271 = vpack.c.b16 %v794, %v791
    %v1272 = vpack.c.b16 %v798, %v795
    %v1273 = vpack.c.b16 %v799, %v796
    %v1274 = vpack.c.b16 %v800, %v797
    %v1275 = vpack.c.b16 %v804, %v801
    %v1276 = vpack.c.b16 %v805, %v802
    %v1277 = vpack.c.b16 %v806, %v803
    %v1278 = vpack.c.b16 %v810, %v807
    %v1279 = vpack.c.b16 %v811, %v808
    %v1280 = vpack.c.b16 %v812, %v809
    %v1281 = vpack.c.b16 %v816, %v813
    %v1282 = vpack.c.b16 %v817, %v814
    %v1283 = vpack.c.b16 %v818, %v815
    %v1284 = vpack.c.b16 %v822, %v819
    %v1285 = vpack.c.b16 %v823, %v820
    %v1286 = vpack.c.b16 %v824, %v821
    %v1287 = vpack.c.b16 %v828, %v825
    %v1288 = vpack.c.b16 %v829, %v826
    %v1289 = vpack.c.b16 %v830, %v827
    %v1290 = vpack.c.b16 %v834, %v831
    %v1291 = vpack.c.b16 %v835, %v832
    %v1292 = vpack.c.b16 %v836, %v833
    %v1293 = vpack.c.b16 %v840, %v837
    %v1294 = vpack.c.b16 %v841, %v838
    %v1295 = vpack.c.b16 %v842, %v839
    %v1296 = vpack.c.b16 %v846, %v843
    %v1297 = vpack.c.b16 %v847, %v844
    %v1298 = vpack.c.b16 %v848, %v845
    %v1299 = vpack.c.b16 %v852, %v849
    %v1300 = vpack.c.b16 %v853, %v850
    %v1301 = vpack.c.b16 %v854, %v851
    %v1302 = vpack.c.b16 %v858, %v855
    %v1303 = vpack.c.b16 %v859, %v856
    %v1304 = vpack.c.b16 %v860, %v857
    %v1305 = vpack.c.b16 %v864, %v861
    %v1306 = vpack.c.b16 %v865, %v862
    %v1307 = vpack.c.b16 %v866, %v863
    %v1308 = vpack.c.b16 %v870, %v867
    %v1309 = vpack.c.b16 %v871, %v868
    %v1310 = vpack.c.b16 %v872, %v869
    %v1311 = vpack.c.b16 %v876, %v873
    %v1312 = vpack.c.b16 %v877, %v874
    %v1313 = vpack.c.b16 %v878, %v875
    %v1314 = vpack.c.b16 %v882, %v879
    %v1315 = vpack.c.b16 %v883, %v880
    %v1316 = vpack.c.b16 %v884, %v881
    %v1317 = vpack.c.b16 %v888, %v885
    %v1318 = vpack.c.b16 %v889, %v886
    %v1319 = vpack.c.b16 %v890, %v887
    %v1320 = vpack.c.b16 %v894, %v891
    %v1321 = vpack.c.b16 %v895, %v892
    %v1322 = vpack.c.b16 %v896, %v893
    %v1323 = vpack.c.b16 %v900, %v897
    %v1324 = vpack.c.b16 %v901, %v898
    %v1325 = vpack.c.b16 %v902, %v899
    %v1326 = vpack.c.b16 %v906, %v903
    %v1327 = vpack.c.b16 %v907, %v904
    %v1328 = vpack.c.b16 %v908, %v905
    %v1329 = vpack.c.b16 %v912, %v909
    %v1330 = vpack.c.b16 %v913, %v910
    %v1331 = vpack.c.b16 %v914, %v911
    %v1332 = vpack.c.b16 %v918, %v915
    %v1333 = vpack.c.b16 %v919, %v916
    %v1334 = vpack.c.b16 %v920, %v917
    %v1335 = vpack.c.b16 %v924, %v921
    %v1336 = vpack.c.b16 %v925, %v922
    %v1337 = vpack.c.b16 %v926, %v923
    %v1338 = vpack.c.b16 %v930, %v927
    %v1339 = vpack.c.b16 %v931, %v928
    %v1340 = vpack.c.b16 %v932, %v929
    %v1341 = vpack.c.b16 %v936, %v933
    %v1342 = vpack.c.b16 %v937, %v934
    %v1343 = vpack.c.b16 %v938, %v935
    %v1344 = vpack.c.b16 %v942, %v939
    %v1345 = vpack.c.b16 %v943, %v940
    %v1346 = vpack.c.b16 %v944, %v941
    %v1347 = vpack.c.b16 %v948, %v945
    %v1348 = vpack.c.b16 %v949, %v946
    %v1349 = vpack.c.b16 %v950, %v947
    %v1350 = vpack.c.b16 %v954, %v951
    %v1351 = vpack.c.b16 %v955, %v952
    %v1352 = vpack.c.b16 %v956, %v953
    %v1353 = vpack.c.b16 %v960, %v957
    %v1354 = vpack.c.b16 %v961, %v958
    %v1355 = vpack.c.b16 %v962, %v959
    %v1356 = vpack.c.b16 %v966, %v963
    %v1357 = vpack.c.b16 %v967, %v964
    %v1358 = vpack.c.b16 %v968, %v965
    %v1359 = vpack.c.b16 %v972, %v969
    %v1360 = vpack.c.b16 %v973, %v970
    %v1361 = vpack.c.b16 %v974, %v971
    %v1362 = vpack.c.b16 %v978, %v975
    %v1363 = vpack.c.b16 %v979, %v976
    %v1364 = vpack.c.b16 %v980, %v977
    %v1365 = vpack.c.b16 %v984, %v981
    %v1366 = vpack.c.b16 %v985, %v982
    %v1367 = vpack.c.b16 %v986, %v983
    %v1368 = vpack.c.b16 %v990, %v987
    %v1369 = vpack.c.b16 %v991, %v988
    %v1370 = vpack.c.b16 %v992, %v989
    %v1371 = vpack.c.b16 %v996, %v993
    %v1372 = vpack.c.b16 %v997, %v994
    %v1373 = vpack.c.b16 %v998, %v995
    %v1374 = vpack.c.b16 %v1002, %v999
    %v1375 = vpack.c.b16 %v1003, %v1000
    %v1376 = vpack.c.b16 %v1004, %v1001
    %v1377 = vpack.c.b16 %v1008, %v1005
    %v1378 = vpack.c.b16 %v1009, %v1006
    %v1379 = vpack.c.b16 %v1010, %v1007
    %v1380 = vpack.c.b16 %v1014, %v1011
    %v1381 = vpack.c.b16 %v1015, %v1012
    %v1382 = vpack.c.b16 %v1016, %v1013
    %v1383 = vpack.c.b16 %v1020, %v1017
    %v1384 = vpack.c.b16 %v1021, %v1018
    %v1385 = vpack.c.b16 %v1022, %v1019
    %v1386 = vpack.c.b16 %v1026, %v1023
    %v1387 = vpack.c.b16 %v1027, %v1024
    %v1388 = vpack.c.b16 %v1028, %v1025
    %v1389 = vpack.c.b16 %v1032, %v1029
    %v1390 = vpack.c.b16 %v1033, %v1030
    %v1391 = vpack.c.b16 %v1034, %v1031
    %v1392 = vpack.c.b16 %v1038, %v1035
    %v1393 = vpack.c.b16 %v1039, %v1036
    %v1394 = vpack.c.b16 %v1040, %v1037
    %v1395 = vpack.c.b16 %v1044, %v1041
    %v1396 = vpack.c.b16 %v1045, %v1042
    %v1397 = vpack.c.b16 %v1046, %v1043
    %v1398 = vpack.c.b16 %v1050, %v1047
    %v1399 = vpack.c.b16 %v1051, %v1048
    %v1400 = vpack.c.b16 %v1052, %v1049
    %v1401 = vpack.c.b16 %v1056, %v1053
    %v1402 = vpack.c.b16 %v1057, %v1054
    %v1403 = vpack.c.b16 %v1058, %v1055
    %v1404 = vpack.c.b16 %v1062, %v1059
    %v1405 = vpack.c.b16 %v1063, %v1060
    %v1406 = vpack.c.b16 %v1064, %v1061
    %v1407 = vpack.c.b16 %v1068, %v1065
    %v1408 = vpack.c.b16 %v1069, %v1066
    %v1409 = vpack.c.b16 %v1070, %v1067
    %v1410 = vpack.c.b16 %v1074, %v1071
    %v1411 = vpack.c.b16 %v1075, %v1072
    %v1412 = vpack.c.b16 %v1076, %v1073
    %v1413 = vpack.c.b16 %v1080, %v1077
    %v1414 = vpack.c.b16 %v1081, %v1078
    %v1415 = vpack.c.b16 %v1082, %v1079
    %v1416 = vpack.c.b16 %v1086, %v1083
    %v1417 = vpack.c.b16 %v1087, %v1084
    %v1418 = vpack.c.b16 %v1088, %v1085
    %v1419 = vpack.c.b16 %v1092, %v1089
    %v1420 = vpack.c.b16 %v1093, %v1090
    %v1421 = vpack.c.b16 %v1094, %v1091
    %v1422 = vpack.c.b16 %v1098, %v1095
    %v1423 = vpack.c.b16 %v1099, %v1096
    %v1424 = vpack.c.b16 %v1100, %v1097
    %v1425 = vpack.c.b16 %v1104, %v1101
    %v1426 = vpack.c.b16 %v1105, %v1102
    %v1427 = vpack.c.b16 %v1106, %v1103
    %v1428 = vpack.c.b16 %v1110, %v1107
    %v1429 = vpack.c.b16 %v1111, %v1108
    %v1430 = vpack.c.b16 %v1112, %v1109
    %v1431 = vpack.c.b16 %v1116, %v1113
    %v1432 = vpack.c.b16 %v1117, %v1114
    %v1433 = vpack.c.b16 %v1118, %v1115
    %v1434 = vpack.c.b16 %v1122, %v1119
    %v1435 = vpack.c.b16 %v1123, %v1120
    %v1436 = vpack.c.b16 %v1124, %v1121
    %v1437 = vpack.c.b16 %v1128, %v1125
    %v1438 = vpack.c.b16 %v1129, %v1126
    %v1439 = vpack.c.b16 %v1130, %v1127
    %v1440 = vpack.c.b16 %v1134, %v1131
    %v1441 = vpack.c.b16 %v1135, %v1132
    %v1442 = vpack.c.b16 %v1136, %v1133
    %v1443 = vpack.c.b16 %v1140, %v1137
    %v1444 = vpack.c.b16 %v1141, %v1138
    %v1445 = vpack.c.b16 %v1142, %v1139
    %v1446 = vpack.c.b16 %v1146, %v1143
    %v1447 = vpack.c.b16 %v1147, %v1144
    %v1448 = vpack.c.b16 %v1148, %v1145
    %v1449 = vpack.c.b16 %v1152, %v1149
    %v1450 = vpack.c.b16 %v1153, %v1150
    %v1451 = vpack.c.b16 %v1154, %v1151
    %v1452 = vpack.c.b16 %v1158, %v1155
    %v1453 = vpack.c.b16 %v1159, %v1156
    %v1454 = vpack.c.b16 %v1160, %v1157
    %v1455 = vpack.c.b16 %v1164, %v1161
    %v1456 = vpack.c.b16 %v1165, %v1162
    %v1457 = vpack.c.b16 %v1166, %v1163
    %v1458 = vpack.c.b16 %v1170, %v1167
    %v1459 = vpack.c.b16 %v1171, %v1168
    %v1460 = vpack.c.b16 %v1172, %v1169
    %v1461 = vpack.c.b16 %v1176, %v1173
    %v1462 = vpack.c.b16 %v1177, %v1174
    %v1463 = vpack.c.b16 %v1178, %v1175
    %v1464 = vpack.c.b16 %v1182, %v1179
    %v1465 = vpack.c.b16 %v1183, %v1180
    %v1466 = vpack.c.b16 %v1184, %v1181
    %v1467 = vpack.c.b16 %v1188, %v1185
    %v1468 = vpack.c.b16 %v1189, %v1186
    %v1469 = vpack.c.b16 %v1190, %v1187
    %v1470 = vpack.c.b16 %v1194, %v1191
    %v1471 = vpack.c.b16 %v1195, %v1192
    %v1472 = vpack.c.b16 %v1196, %v1193
    %v1473 = vpack.c.b16 %v1200, %v1197
    %v1474 = vpack.c.b16 %v1201, %v1198
    %v1475 = vpack.c.b16 %v1202, %v1199
    %v1476 = vpack.c.b16 %v1206, %v1203
    %v1477 = vpack.c.b16 %v1207, %v1204
    %v1478 = vpack.c.b16 %v1208, %v1205
    %v1479 = vpack.c.b16 %v1212, %v1209
    %v1480 = vpack.c.b16 %v1213, %v1210
    %v1481 = vpack.c.b16 %v1214, %v1211
    %v1482 = vpack.c.b16 %v1218, %v1215
    %v1483 = vpack.c.b16 %v1219, %v1216
    %v1484 = vpack.c.b16 %v1220, %v1217
    %v1485 = vpack.c.b16 %v1224, %v1221
    %v1486 = vpack.c.b16 %v1225, %v1222
    %v1487 = vpack.c.b16 %v1226, %v1223
    %v1488 = vpack.c.b16 %v1230, %v1227
    %v1489 = vpack.c.b16 %v1231, %v1228
    %v1490 = vpack.c.b16 %v1232, %v1229
    %v1491 = vpack.c.b16 %v1236, %v1233
    %v1492 = vpack.c.b16 %v1237, %v1234
    %v1493 = vpack.c.b16 %v1238, %v1235
    %v1494 = vpack.c.b16 %v1242, %v1239
    %v1495 = vpack.c.b16 %v1243, %v1240
    %v1496 = vpack.c.b16 %v1244, %v1241
    %v1497 = vpack.c.b16 %v1248, %v1245
    %v1498 = vpack.c.b16 %v1249, %v1246
    %v1499 = vpack.c.b16 %v1250, %v1247
    %v1500 = vpack.c.b16 %v1254, %v1251
    %v1501 = vpack.c.b16 %v1255, %v1252
    %v1502 = vpack.c.b16 %v1256, %v1253
    %v1503 = vpack.c.b16 %v1260, %v1257
    %v1504 = vpack.c.b16 %v1261, %v1258
    %v1505 = vpack.c.b16 %v1262, %v1259
    %v1506 = vpack.c.b16 %v1266, %v1263
    %v1507 = vpack.c.b16 %v1267, %v1264
    %v1508 = vpack.c.b16 %v1268, %v1265
    %1749 = vmatpush.bf16.msra.mxu0 %v1290
    %1750 = vmatpush.bf16.msra.mxu0 %v1287
    %1751 = vmatpush.bf16.msra.mxu0 %v1284
    %1752 = vmatpush.bf16.msra.mxu0 %v1281
    %1753 = vmatpush.bf16.msra.mxu0 %v1278
    %1754 = vmatpush.bf16.msra.mxu0 %v1275
    %1755 = vmatpush.bf16.msra.mxu0 %v1272
    %1756 = vmatpush.bf16.msra.mxu0 %v1269
    %1757 = vmatmul.bf16.gmra.mxu0 %v449
    %v1758 = vpop.f32.mrf.mxu0
    %v1759 = vadd.f32 %v428, %v1758
    %v1760 = vpop.f32.mrf.mxu0
    %1761 = vdwg.mxu0
    %1762 = vmatpush.bf16.msra.mxu0 %v1314
    %1763 = vmatpush.bf16.msra.mxu0 %v1311
    %1764 = vmatpush.bf16.msra.mxu0 %v1308
    %1765 = vmatpush.bf16.msra.mxu0 %v1305
    %1766 = vmatpush.bf16.msra.mxu0 %v1302
    %1767 = vmatpush.bf16.msra.mxu0 %v1299
    %1768 = vmatpush.bf16.msra.mxu0 %v1296
    %1769 = vmatpush.bf16.msra.mxu0 %v1293
    %1770 = vmatmul.bf16.gmra.mxu0 %v450
    %v1771 = vpop.f32.mrf.mxu0
    %v1772 = vadd.f32 %v1759, %v1771
    %v1773 = vpop.f32.mrf.mxu0
    %1774 = vdwg.mxu0
    %1775 = vmatpush.bf16.msra.mxu0 %v1338
    %1776 = vmatpush.bf16.msra.mxu0 %v1335
    %1777 = vmatpush.bf16.msra.mxu0 %v1332
    %1778 = vmatpush.bf16.msra.mxu0 %v1329
    %1779 = vmatpush.bf16.msra.mxu0 %v1326
    %1780 = vmatpush.bf16.msra.mxu0 %v1323
    %1781 = vmatpush.bf16.msra.mxu0 %v1320
    %1782 = vmatpush.bf16.msra.mxu0 %v1317
    %1783 = vmatmul.bf16.gmra.mxu0 %v451
    %v1784 = vpop.f32.mrf.mxu0
    %v1785 = vadd.f32 %v1772, %v1784
    %v1786 = vpop.f32.mrf.mxu0
    %1787 = vdwg.mxu0
    %1788 = vmatpush.bf16.msra.mxu0 %v1362
    %1789 = vmatpush.bf16.msra.mxu0 %v1359
    %1790 = vmatpush.bf16.msra.mxu0 %v1356
    %1791 = vmatpush.bf16.msra.mxu0 %v1353
    %1792 = vmatpush.bf16.msra.mxu0 %v1350
    %1793 = vmatpush.bf16.msra.mxu0 %v1347
    %1794 = vmatpush.bf16.msra.mxu0 %v1344
    %1795 = vmatpush.bf16.msra.mxu0 %v1341
    %1796 = vmatmul.bf16.gmra.mxu0 %v452
    %v1797 = vpop.f32.mrf.mxu0
    %v1798 = vadd.f32 %v1785, %v1797
    %v1799 = vpop.f32.mrf.mxu0
    %1800 = vdwg.mxu0
    %1801 = vmatpush.bf16.msra.mxu0 %v1386
    %1802 = vmatpush.bf16.msra.mxu0 %v1383
    %1803 = vmatpush.bf16.msra.mxu0 %v1380
    %1804 = vmatpush.bf16.msra.mxu0 %v1377
    %1805 = vmatpush.bf16.msra.mxu0 %v1374
    %1806 = vmatpush.bf16.msra.mxu0 %v1371
    %1807 = vmatpush.bf16.msra.mxu0 %v1368
    %1808 = vmatpush.bf16.msra.mxu0 %v1365
    %1809 = vmatmul.bf16.gmra.mxu0 %v453
    %v1810 = vpop.f32.mrf.mxu0
    %v1811 = vadd.f32 %v1798, %v1810
    %v1812 = vpop.f32.mrf.mxu0
    %1813 = vdwg.mxu0
    %1814 = vmatpush.bf16.msra.mxu0 %v1410
    %1815 = vmatpush.bf16.msra.mxu0 %v1407
    %1816 = vmatpush.bf16.msra.mxu0 %v1404
    %1817 = vmatpush.bf16.msra.mxu0 %v1401
    %1818 = vmatpush.bf16.msra.mxu0 %v1398
    %1819 = vmatpush.bf16.msra.mxu0 %v1395
    %1820 = vmatpush.bf16.msra.mxu0 %v1392
    %1821 = vmatpush.bf16.msra.mxu0 %v1389
    %1822 = vmatmul.bf16.gmra.mxu0 %v454
    %v1823 = vpop.f32.mrf.mxu0
    %v1824 = vadd.f32 %v1811, %v1823
    %v1825 = vpop.f32.mrf.mxu0
    %1826 = vdwg.mxu0
    %1827 = vmatpush.bf16.msra.mxu0 %v1434
    %1828 = vmatpush.bf16.msra.mxu0 %v1431
    %1829 = vmatpush.bf16.msra.mxu0 %v1428
    %1830 = vmatpush.bf16.msra.mxu0 %v1425
    %1831 = vmatpush.bf16.msra.mxu0 %v1422
    %1832 = vmatpush.bf16.msra.mxu0 %v1419
    %1833 = vmatpush.bf16.msra.mxu0 %v1416
    %1834 = vmatpush.bf16.msra.mxu0 %v1413
    %1835 = vmatmul.bf16.gmra.mxu0 %v455
    %v1836 = vpop.f32.mrf.mxu0
    %v1837 = vadd.f32 %v1824, %v1836
    %v1838 = vpop.f32.mrf.mxu0
    %1839 = vdwg.mxu0
    %1840 = vmatpush.bf16.msra.mxu0 %v1458
    %1841 = vmatpush.bf16.msra.mxu0 %v1455
    %1842 = vmatpush.bf16.msra.mxu0 %v1452
    %1843 = vmatpush.bf16.msra.mxu0 %v1449
    %1844 = vmatpush.bf16.msra.mxu0 %v1446
    %1845 = vmatpush.bf16.msra.mxu0 %v1443
    %1846 = vmatpush.bf16.msra.mxu0 %v1440
    %1847 = vmatpush.bf16.msra.mxu0 %v1437
    %1848 = vmatmul.bf16.gmra.mxu0 %v456
    %v1849 = vpop.f32.mrf.mxu0
    %v1850 = vadd.f32 %v1837, %v1849
    %v1851 = vpop.f32.mrf.mxu0
    %1852 = vdwg.mxu0
    %1853 = vmatpush.bf16.msra.mxu0 %v1482
    %1854 = vmatpush.bf16.msra.mxu0 %v1479
    %1855 = vmatpush.bf16.msra.mxu0 %v1476
    %1856 = vmatpush.bf16.msra.mxu0 %v1473
    %1857 = vmatpush.bf16.msra.mxu0 %v1470
    %1858 = vmatpush.bf16.msra.mxu0 %v1467
    %1859 = vmatpush.bf16.msra.mxu0 %v1464
    %1860 = vmatpush.bf16.msra.mxu0 %v1461
    %1861 = vmatmul.bf16.gmra.mxu0 %v457
    %v1862 = vpop.f32.mrf.mxu0
    %v1863 = vadd.f32 %v1850, %v1862
    %v1864 = vpop.f32.mrf.mxu0
    %1865 = vdwg.mxu0
    %1866 = vmatpush.bf16.msra.mxu0 %v1506
    %1867 = vmatpush.bf16.msra.mxu0 %v1503
    %1868 = vmatpush.bf16.msra.mxu0 %v1500
    %1869 = vmatpush.bf16.msra.mxu0 %v1497
    %1870 = vmatpush.bf16.msra.mxu0 %v1494
    %1871 = vmatpush.bf16.msra.mxu0 %v1491
    %1872 = vmatpush.bf16.msra.mxu0 %v1488
    %1873 = vmatpush.bf16.msra.mxu0 %v1485
    %1874 = vmatmul.bf16.gmra.mxu0 %v458
    %v1875 = vpop.f32.mrf.mxu0
    %v1876 = vadd.f32 %v1863, %v1875
    %v1877 = vpop.f32.mrf.mxu0
    %1878 = vdwg.mxu0
    %1879 = vmatpush.bf16.msra.mxu0 %v1291
    %1880 = vmatpush.bf16.msra.mxu0 %v1288
    %1881 = vmatpush.bf16.msra.mxu0 %v1285
    %1882 = vmatpush.bf16.msra.mxu0 %v1282
    %1883 = vmatpush.bf16.msra.mxu0 %v1279
    %1884 = vmatpush.bf16.msra.mxu0 %v1276
    %1885 = vmatpush.bf16.msra.mxu0 %v1273
    %1886 = vmatpush.bf16.msra.mxu0 %v1270
    %1887 = vmatmul.bf16.gmra.mxu0 %v449
    %v1888 = vpop.f32.mrf.mxu0
    %v1889 = vadd.f32 %v429, %v1888
    %v1890 = vpop.f32.mrf.mxu0
    %1891 = vdwg.mxu0
    %1892 = vmatpush.bf16.msra.mxu0 %v1315
    %1893 = vmatpush.bf16.msra.mxu0 %v1312
    %1894 = vmatpush.bf16.msra.mxu0 %v1309
    %1895 = vmatpush.bf16.msra.mxu0 %v1306
    %1896 = vmatpush.bf16.msra.mxu0 %v1303
    %1897 = vmatpush.bf16.msra.mxu0 %v1300
    %1898 = vmatpush.bf16.msra.mxu0 %v1297
    %1899 = vmatpush.bf16.msra.mxu0 %v1294
    %1900 = vmatmul.bf16.gmra.mxu0 %v450
    %v1901 = vpop.f32.mrf.mxu0
    %v1902 = vadd.f32 %v1889, %v1901
    %v1903 = vpop.f32.mrf.mxu0
    %1904 = vdwg.mxu0
    %1905 = vmatpush.bf16.msra.mxu0 %v1339
    %1906 = vmatpush.bf16.msra.mxu0 %v1336
    %1907 = vmatpush.bf16.msra.mxu0 %v1333
    %1908 = vmatpush.bf16.msra.mxu0 %v1330
    %1909 = vmatpush.bf16.msra.mxu0 %v1327
    %1910 = vmatpush.bf16.msra.mxu0 %v1324
    %1911 = vmatpush.bf16.msra.mxu0 %v1321
    %1912 = vmatpush.bf16.msra.mxu0 %v1318
    %1913 = vmatmul.bf16.gmra.mxu0 %v451
    %v1914 = vpop.f32.mrf.mxu0
    %v1915 = vadd.f32 %v1902, %v1914
    %v1916 = vpop.f32.mrf.mxu0
    %1917 = vdwg.mxu0
    %1918 = vmatpush.bf16.msra.mxu0 %v1363
    %1919 = vmatpush.bf16.msra.mxu0 %v1360
    %1920 = vmatpush.bf16.msra.mxu0 %v1357
    %1921 = vmatpush.bf16.msra.mxu0 %v1354
    %1922 = vmatpush.bf16.msra.mxu0 %v1351
    %1923 = vmatpush.bf16.msra.mxu0 %v1348
    %1924 = vmatpush.bf16.msra.mxu0 %v1345
    %1925 = vmatpush.bf16.msra.mxu0 %v1342
    %1926 = vmatmul.bf16.gmra.mxu0 %v452
    %v1927 = vpop.f32.mrf.mxu0
    %v1928 = vadd.f32 %v1915, %v1927
    %v1929 = vpop.f32.mrf.mxu0
    %1930 = vdwg.mxu0
    %1931 = vmatpush.bf16.msra.mxu0 %v1387
    %1932 = vmatpush.bf16.msra.mxu0 %v1384
    %1933 = vmatpush.bf16.msra.mxu0 %v1381
    %1934 = vmatpush.bf16.msra.mxu0 %v1378
    %1935 = vmatpush.bf16.msra.mxu0 %v1375
    %1936 = vmatpush.bf16.msra.mxu0 %v1372
    %1937 = vmatpush.bf16.msra.mxu0 %v1369
    %1938 = vmatpush.bf16.msra.mxu0 %v1366
    %1939 = vmatmul.bf16.gmra.mxu0 %v453
    %v1940 = vpop.f32.mrf.mxu0
    %v1941 = vadd.f32 %v1928, %v1940
    %v1942 = vpop.f32.mrf.mxu0
    %1943 = vdwg.mxu0
    %1944 = vmatpush.bf16.msra.mxu0 %v1411
    %1945 = vmatpush.bf16.msra.mxu0 %v1408
    %1946 = vmatpush.bf16.msra.mxu0 %v1405
    %1947 = vmatpush.bf16.msra.mxu0 %v1402
    %1948 = vmatpush.bf16.msra.mxu0 %v1399
    %1949 = vmatpush.bf16.msra.mxu0 %v1396
    %1950 = vmatpush.bf16.msra.mxu0 %v1393
    %1951 = vmatpush.bf16.msra.mxu0 %v1390
    %1952 = vmatmul.bf16.gmra.mxu0 %v454
    %v1953 = vpop.f32.mrf.mxu0
    %v1954 = vadd.f32 %v1941, %v1953
    %v1955 = vpop.f32.mrf.mxu0
    %1956 = vdwg.mxu0
    %1957 = vmatpush.bf16.msra.mxu0 %v1435
    %1958 = vmatpush.bf16.msra.mxu0 %v1432
    %1959 = vmatpush.bf16.msra.mxu0 %v1429
    %1960 = vmatpush.bf16.msra.mxu0 %v1426
    %1961 = vmatpush.bf16.msra.mxu0 %v1423
    %1962 = vmatpush.bf16.msra.mxu0 %v1420
    %1963 = vmatpush.bf16.msra.mxu0 %v1417
    %1964 = vmatpush.bf16.msra.mxu0 %v1414
    %1965 = vmatmul.bf16.gmra.mxu0 %v455
    %v1966 = vpop.f32.mrf.mxu0
    %v1967 = vadd.f32 %v1954, %v1966
    %v1968 = vpop.f32.mrf.mxu0
    %1969 = vdwg.mxu0
    %1970 = vmatpush.bf16.msra.mxu0 %v1459
    %1971 = vmatpush.bf16.msra.mxu0 %v1456
    %1972 = vmatpush.bf16.msra.mxu0 %v1453
    %1973 = vmatpush.bf16.msra.mxu0 %v1450
    %1974 = vmatpush.bf16.msra.mxu0 %v1447
    %1975 = vmatpush.bf16.msra.mxu0 %v1444
    %1976 = vmatpush.bf16.msra.mxu0 %v1441
    %1977 = vmatpush.bf16.msra.mxu0 %v1438
    %1978 = vmatmul.bf16.gmra.mxu0 %v456
    %v1979 = vpop.f32.mrf.mxu0
    %v1980 = vadd.f32 %v1967, %v1979
    %v1981 = vpop.f32.mrf.mxu0
    %1982 = vdwg.mxu0
    %1983 = vmatpush.bf16.msra.mxu0 %v1483
    %1984 = vmatpush.bf16.msra.mxu0 %v1480
    %1985 = vmatpush.bf16.msra.mxu0 %v1477
    %1986 = vmatpush.bf16.msra.mxu0 %v1474
    %1987 = vmatpush.bf16.msra.mxu0 %v1471
    %1988 = vmatpush.bf16.msra.mxu0 %v1468
    %1989 = vmatpush.bf16.msra.mxu0 %v1465
    %1990 = vmatpush.bf16.msra.mxu0 %v1462
    %1991 = vmatmul.bf16.gmra.mxu0 %v457
    %v1992 = vpop.f32.mrf.mxu0
    %v1993 = vadd.f32 %v1980, %v1992
    %v1994 = vpop.f32.mrf.mxu0
    %1995 = vdwg.mxu0
    %1996 = vmatpush.bf16.msra.mxu0 %v1507
    %1997 = vmatpush.bf16.msra.mxu0 %v1504
    %1998 = vmatpush.bf16.msra.mxu0 %v1501
    %1999 = vmatpush.bf16.msra.mxu0 %v1498
    %2000 = vmatpush.bf16.msra.mxu0 %v1495
    %2001 = vmatpush.bf16.msra.mxu0 %v1492
    %2002 = vmatpush.bf16.msra.mxu0 %v1489
    %2003 = vmatpush.bf16.msra.mxu0 %v1486
    %2004 = vmatmul.bf16.gmra.mxu0 %v458
    %v2005 = vpop.f32.mrf.mxu0
    %v2006 = vadd.f32 %v1993, %v2005
    %v2007 = vpop.f32.mrf.mxu0
    %2008 = vdwg.mxu0
    %2009 = vmatpush.bf16.msra.mxu0 %v1292
    %2010 = vmatpush.bf16.msra.mxu0 %v1289
    %2011 = vmatpush.bf16.msra.mxu0 %v1286
    %2012 = vmatpush.bf16.msra.mxu0 %v1283
    %2013 = vmatpush.bf16.msra.mxu0 %v1280
    %2014 = vmatpush.bf16.msra.mxu0 %v1277
    %2015 = vmatpush.bf16.msra.mxu0 %v1274
    %2016 = vmatpush.bf16.msra.mxu0 %v1271
    %2017 = vmatmul.bf16.gmra.mxu0 %v449
    %v2018 = vpop.f32.mrf.mxu0
    %v2019 = vadd.f32 %v430, %v2018
    %v2020 = vpop.f32.mrf.mxu0
    %2021 = vdwg.mxu0
    %2022 = vmatpush.bf16.msra.mxu0 %v1316
    %2023 = vmatpush.bf16.msra.mxu0 %v1313
    %2024 = vmatpush.bf16.msra.mxu0 %v1310
    %2025 = vmatpush.bf16.msra.mxu0 %v1307
    %2026 = vmatpush.bf16.msra.mxu0 %v1304
    %2027 = vmatpush.bf16.msra.mxu0 %v1301
    %2028 = vmatpush.bf16.msra.mxu0 %v1298
    %2029 = vmatpush.bf16.msra.mxu0 %v1295
    %2030 = vmatmul.bf16.gmra.mxu0 %v450
    %v2031 = vpop.f32.mrf.mxu0
    %v2032 = vadd.f32 %v2019, %v2031
    %v2033 = vpop.f32.mrf.mxu0
    %2034 = vdwg.mxu0
    %2035 = vmatpush.bf16.msra.mxu0 %v1340
    %2036 = vmatpush.bf16.msra.mxu0 %v1337
    %2037 = vmatpush.bf16.msra.mxu0 %v1334
    %2038 = vmatpush.bf16.msra.mxu0 %v1331
    %2039 = vmatpush.bf16.msra.mxu0 %v1328
    %2040 = vmatpush.bf16.msra.mxu0 %v1325
    %2041 = vmatpush.bf16.msra.mxu0 %v1322
    %2042 = vmatpush.bf16.msra.mxu0 %v1319
    %2043 = vmatmul.bf16.gmra.mxu0 %v451
    %v2044 = vpop.f32.mrf.mxu0
    %v2045 = vadd.f32 %v2032, %v2044
    %v2046 = vpop.f32.mrf.mxu0
    %2047 = vdwg.mxu0
    %2048 = vmatpush.bf16.msra.mxu0 %v1364
    %2049 = vmatpush.bf16.msra.mxu0 %v1361
    %2050 = vmatpush.bf16.msra.mxu0 %v1358
    %2051 = vmatpush.bf16.msra.mxu0 %v1355
    %2052 = vmatpush.bf16.msra.mxu0 %v1352
    %2053 = vmatpush.bf16.msra.mxu0 %v1349
    %2054 = vmatpush.bf16.msra.mxu0 %v1346
    %2055 = vmatpush.bf16.msra.mxu0 %v1343
    %2056 = vmatmul.bf16.gmra.mxu0 %v452
    %v2057 = vpop.f32.mrf.mxu0
    %v2058 = vadd.f32 %v2045, %v2057
    %v2059 = vpop.f32.mrf.mxu0
    %2060 = vdwg.mxu0
    %2061 = vmatpush.bf16.msra.mxu0 %v1388
    %2062 = vmatpush.bf16.msra.mxu0 %v1385
    %2063 = vmatpush.bf16.msra.mxu0 %v1382
    %2064 = vmatpush.bf16.msra.mxu0 %v1379
    %2065 = vmatpush.bf16.msra.mxu0 %v1376
    %2066 = vmatpush.bf16.msra.mxu0 %v1373
    %2067 = vmatpush.bf16.msra.mxu0 %v1370
    %2068 = vmatpush.bf16.msra.mxu0 %v1367
    %2069 = vmatmul.bf16.gmra.mxu0 %v453
    %v2070 = vpop.f32.mrf.mxu0
    %v2071 = vadd.f32 %v2058, %v2070
    %v2072 = vpop.f32.mrf.mxu0
    %2073 = vdwg.mxu0
    %2074 = vmatpush.bf16.msra.mxu0 %v1412
    %2075 = vmatpush.bf16.msra.mxu0 %v1409
    %2076 = vmatpush.bf16.msra.mxu0 %v1406
    %2077 = vmatpush.bf16.msra.mxu0 %v1403
    %2078 = vmatpush.bf16.msra.mxu0 %v1400
    %2079 = vmatpush.bf16.msra.mxu0 %v1397
    %2080 = vmatpush.bf16.msra.mxu0 %v1394
    %2081 = vmatpush.bf16.msra.mxu0 %v1391
    %2082 = vmatmul.bf16.gmra.mxu0 %v454
    %v2083 = vpop.f32.mrf.mxu0
    %v2084 = vadd.f32 %v2071, %v2083
    %v2085 = vpop.f32.mrf.mxu0
    %2086 = vdwg.mxu0
    %2087 = vmatpush.bf16.msra.mxu0 %v1436
    %2088 = vmatpush.bf16.msra.mxu0 %v1433
    %2089 = vmatpush.bf16.msra.mxu0 %v1430
    %2090 = vmatpush.bf16.msra.mxu0 %v1427
    %2091 = vmatpush.bf16.msra.mxu0 %v1424
    %2092 = vmatpush.bf16.msra.mxu0 %v1421
    %2093 = vmatpush.bf16.msra.mxu0 %v1418
    %2094 = vmatpush.bf16.msra.mxu0 %v1415
    %2095 = vmatmul.bf16.gmra.mxu0 %v455
    %v2096 = vpop.f32.mrf.mxu0
    %v2097 = vadd.f32 %v2084, %v2096
    %v2098 = vpop.f32.mrf.mxu0
    %2099 = vdwg.mxu0
    %2100 = vmatpush.bf16.msra.mxu0 %v1460
    %2101 = vmatpush.bf16.msra.mxu0 %v1457
    %2102 = vmatpush.bf16.msra.mxu0 %v1454
    %2103 = vmatpush.bf16.msra.mxu0 %v1451
    %2104 = vmatpush.bf16.msra.mxu0 %v1448
    %2105 = vmatpush.bf16.msra.mxu0 %v1445
    %2106 = vmatpush.bf16.msra.mxu0 %v1442
    %2107 = vmatpush.bf16.msra.mxu0 %v1439
    %2108 = vmatmul.bf16.gmra.mxu0 %v456
    %v2109 = vpop.f32.mrf.mxu0
    %v2110 = vadd.f32 %v2097, %v2109
    %v2111 = vpop.f32.mrf.mxu0
    %2112 = vdwg.mxu0
    %2113 = vmatpush.bf16.msra.mxu0 %v1484
    %2114 = vmatpush.bf16.msra.mxu0 %v1481
    %2115 = vmatpush.bf16.msra.mxu0 %v1478
    %2116 = vmatpush.bf16.msra.mxu0 %v1475
    %2117 = vmatpush.bf16.msra.mxu0 %v1472
    %2118 = vmatpush.bf16.msra.mxu0 %v1469
    %2119 = vmatpush.bf16.msra.mxu0 %v1466
    %2120 = vmatpush.bf16.msra.mxu0 %v1463
    %2121 = vmatmul.bf16.gmra.mxu0 %v457
    %v2122 = vpop.f32.mrf.mxu0
    %v2123 = vadd.f32 %v2110, %v2122
    %v2124 = vpop.f32.mrf.mxu0
    %2125 = vdwg.mxu0
    %2126 = vmatpush.bf16.msra.mxu0 %v1508
    %2127 = vmatpush.bf16.msra.mxu0 %v1505
    %2128 = vmatpush.bf16.msra.mxu0 %v1502
    %2129 = vmatpush.bf16.msra.mxu0 %v1499
    %2130 = vmatpush.bf16.msra.mxu0 %v1496
    %2131 = vmatpush.bf16.msra.mxu0 %v1493
    %2132 = vmatpush.bf16.msra.mxu0 %v1490
    %2133 = vmatpush.bf16.msra.mxu0 %v1487
    %2134 = vmatmul.bf16.gmra.mxu0 %v458
    %v2135 = vpop.f32.mrf.mxu0
    %v2136 = vadd.f32 %v2123, %v2135
    %v2137 = vpop.f32.mrf.mxu0
    %2138 = vdwg.mxu0
    %v2139 = vtanh.pop %v1876
    %v2140 = vtanh.pop %v2006
    %v2141 = vtanh.pop %v2136
    %v2142 = vpack.c.bf16 %v2139, %v2139
    %v2143 = vpack.c.bf16 %v2140, %v2140
    %v2144 = vpack.c.bf16 %v2141, %v2141
    %v2145 = vld [vmem:[#allocation8] sm:$0xff]
    %v2146 = vld [vmem:[#allocation8 + $0x8] sm:$0xf]
    %v2147 = vld [vmem:[#allocation8 + $0xc] sm:$0xff]
    %v2148 = vld [vmem:[#allocation8 + $0x14] sm:$0xf]
    %v2149 = vld [vmem:[#allocation8 + $0x18] sm:$0xff]
    %v2150 = vld [vmem:[#allocation8 + $0x20] sm:$0xf]
    %v2151 = vld [vmem:[#allocation8 + $0x24] sm:$0xff]
    %v2152 = vld [vmem:[#allocation8 + $0x2c] sm:$0xf]
    %v2153 = vld [vmem:[#allocation8 + $0x30] sm:$0xff]
    %v2154 = vld [vmem:[#allocation8 + $0x38] sm:$0xf]
    %v2155 = vld [vmem:[#allocation8 + $0x3c] sm:$0xff]
    %v2156 = vld [vmem:[#allocation8 + $0x44] sm:$0xf]
    %v2157 = vld [vmem:[#allocation8 + $0x48] sm:$0xff]
    %v2158 = vld [vmem:[#allocation8 + $0x50] sm:$0xf]
    %v2159 = vld [vmem:[#allocation8 + $0x54] sm:$0xff]
    %v2160 = vld [vmem:[#allocation8 + $0x5c] sm:$0xf]
    %v2161 = vld [vmem:[#allocation8 + $0x60] sm:$0xff]
    %v2162 = vld [vmem:[#allocation8 + $0x68] sm:$0xf]
    %v2163 = vld [vmem:[#allocation8 + $0x6c] sm:$0xff]
    %v2164 = vld [vmem:[#allocation8 + $0x74] sm:$0xf]
    %v2165 = vld [vmem:[#allocation8 + $0x78] sm:$0xff]
    %v2166 = vld [vmem:[#allocation8 + $0x80] sm:$0xf]
    %v2167 = vld [vmem:[#allocation8 + $0x84] sm:$0xff]
    %v2168 = vld [vmem:[#allocation8 + $0x8c] sm:$0xf]
    %v2169 = vld [vmem:[#allocation8 + $0x90] sm:$0xff]
    %v2170 = vld [vmem:[#allocation8 + $0x98] sm:$0xf]
    %v2171 = vld [vmem:[#allocation8 + $0x9c] sm:$0xff]
    %v2172 = vld [vmem:[#allocation8 + $0xa4] sm:$0xf]
    %v2173 = vld [vmem:[#allocation8 + $0xa8] sm:$0xff]
    %v2174 = vld [vmem:[#allocation8 + $0xb0] sm:$0xf]
    %v2175 = vld [vmem:[#allocation8 + $0xb4] sm:$0xff]
    %v2176 = vld [vmem:[#allocation8 + $0xbc] sm:$0xf]
    %v2177 = vld [vmem:[#allocation8 + $0xc0] sm:$0xff]
    %v2178 = vld [vmem:[#allocation8 + $0xc8] sm:$0xf]
    %v2179 = vld [vmem:[#allocation8 + $0xcc] sm:$0xff]
    %v2180 = vld [vmem:[#allocation8 + $0xd4] sm:$0xf]
    %v2181 = vld [vmem:[#allocation8 + $0xd8] sm:$0xff]
    %v2182 = vld [vmem:[#allocation8 + $0xe0] sm:$0xf]
    %v2183 = vld [vmem:[#allocation8 + $0xe4] sm:$0xff]
    %v2184 = vld [vmem:[#allocation8 + $0xec] sm:$0xf]
    %v2185 = vld [vmem:[#allocation8 + $0xf0] sm:$0xff]
    %v2186 = vld [vmem:[#allocation8 + $0xf8] sm:$0xf]
    %v2187 = vld [vmem:[#allocation8 + $0xfc] sm:$0xff]
    %v2188 = vld [vmem:[#allocation8 + $0x104] sm:$0xf]
    %v2189 = vld [vmem:[#allocation8 + $0x108] sm:$0xff]
    %v2190 = vld [vmem:[#allocation8 + $0x110] sm:$0xf]
    %v2191 = vld [vmem:[#allocation8 + $0x114] sm:$0xff]
    %v2192 = vld [vmem:[#allocation8 + $0x11c] sm:$0xf]
    %v2193 = vld [vmem:[#allocation8 + $0x120] sm:$0xff]
    %v2194 = vld [vmem:[#allocation8 + $0x128] sm:$0xf]
    %v2195 = vld [vmem:[#allocation8 + $0x12c] sm:$0xff]
    %v2196 = vld [vmem:[#allocation8 + $0x134] sm:$0xf]
    %v2197 = vld [vmem:[#allocation8 + $0x138] sm:$0xff]
    %v2198 = vld [vmem:[#allocation8 + $0x140] sm:$0xf]
    %v2199 = vld [vmem:[#allocation8 + $0x144] sm:$0xff]
    %v2200 = vld [vmem:[#allocation8 + $0x14c] sm:$0xf]
    %v2201 = vld [vmem:[#allocation8 + $0x150] sm:$0xff]
    %v2202 = vld [vmem:[#allocation8 + $0x158] sm:$0xf]
    %v2203 = vld [vmem:[#allocation8 + $0x15c] sm:$0xff]
    %v2204 = vld [vmem:[#allocation8 + $0x164] sm:$0xf]
    %v2205 = vld [vmem:[#allocation8 + $0x168] sm:$0xff]
    %v2206 = vld [vmem:[#allocation8 + $0x170] sm:$0xf]
    %v2207 = vld [vmem:[#allocation8 + $0x174] sm:$0xff]
    %v2208 = vld [vmem:[#allocation8 + $0x17c] sm:$0xf]
    %v2209 = vld [vmem:[#allocation8 + $0x180] sm:$0xff]
    %v2210 = vld [vmem:[#allocation8 + $0x188] sm:$0xf]
    %v2211 = vld [vmem:[#allocation8 + $0x18c] sm:$0xff]
    %v2212 = vld [vmem:[#allocation8 + $0x194] sm:$0xf]
    %v2213 = vld [vmem:[#allocation8 + $0x198] sm:$0xff]
    %v2214 = vld [vmem:[#allocation8 + $0x1a0] sm:$0xf]
    %v2215 = vld [vmem:[#allocation8 + $0x1a4] sm:$0xff]
    %v2216 = vld [vmem:[#allocation8 + $0x1ac] sm:$0xf]
    %v2217 = vld [vmem:[#allocation8 + $0x1b0] sm:$0xff]
    %v2218 = vld [vmem:[#allocation8 + $0x1b8] sm:$0xf]
    %v2219 = vld [vmem:[#allocation8 + $0x1bc] sm:$0xff]
    %v2220 = vld [vmem:[#allocation8 + $0x1c4] sm:$0xf]
    %v2221 = vld [vmem:[#allocation8 + $0x1c8] sm:$0xff]
    %v2222 = vld [vmem:[#allocation8 + $0x1d0] sm:$0xf]
    %v2223 = vld [vmem:[#allocation8 + $0x1d4] sm:$0xff]
    %v2224 = vld [vmem:[#allocation8 + $0x1dc] sm:$0xf]
    %v2225 = vld [vmem:[#allocation8 + $0x1e0] sm:$0xff]
    %v2226 = vld [vmem:[#allocation8 + $0x1e8] sm:$0xf]
    %v2227 = vld [vmem:[#allocation8 + $0x1ec] sm:$0xff]
    %v2228 = vld [vmem:[#allocation8 + $0x1f4] sm:$0xf]
    %v2229 = vld [vmem:[#allocation8 + $0x1f8] sm:$0xff]
    %v2230 = vld [vmem:[#allocation8 + $0x200] sm:$0xf]
    %v2231 = vld [vmem:[#allocation8 + $0x204] sm:$0xff]
    %v2232 = vld [vmem:[#allocation8 + $0x20c] sm:$0xf]
    %v2233 = vld [vmem:[#allocation8 + $0x210] sm:$0xff]
    %v2234 = vld [vmem:[#allocation8 + $0x218] sm:$0xf]
    %v2235 = vld [vmem:[#allocation8 + $0x21c] sm:$0xff]
    %v2236 = vld [vmem:[#allocation8 + $0x224] sm:$0xf]
    %v2237 = vld [vmem:[#allocation8 + $0x228] sm:$0xff]
    %v2238 = vld [vmem:[#allocation8 + $0x230] sm:$0xf]
    %v2239 = vld [vmem:[#allocation8 + $0x234] sm:$0xff]
    %v2240 = vld [vmem:[#allocation8 + $0x23c] sm:$0xf]
    %v2241 = vld [vmem:[%s4] sm:$0x7]
    %v2243 = vperm.slane %v2241, 0
    %v2244 = vperm.slane %v2241, 1
    %v2245 = vperm.slane %v2241, 2
    %v2345 = vunpack.c.l.b16 %v2145
    %v2346 = vunpack.c.h.b16 %v2145
    %v2347 = vunpack.c.l.b16 %v2146
    %v2348 = vunpack.c.l.b16 %v2147
    %v2349 = vunpack.c.h.b16 %v2147
    %v2350 = vunpack.c.l.b16 %v2148
    %v2351 = vunpack.c.l.b16 %v2149
    %v2352 = vunpack.c.h.b16 %v2149
    %v2353 = vunpack.c.l.b16 %v2150
    %v2354 = vunpack.c.l.b16 %v2151
    %v2355 = vunpack.c.h.b16 %v2151
    %v2356 = vunpack.c.l.b16 %v2152
    %v2357 = vunpack.c.l.b16 %v2153
    %v2358 = vunpack.c.h.b16 %v2153
    %v2359 = vunpack.c.l.b16 %v2154
    %v2360 = vunpack.c.l.b16 %v2155
    %v2361 = vunpack.c.h.b16 %v2155
    %v2362 = vunpack.c.l.b16 %v2156
    %v2363 = vunpack.c.l.b16 %v2157
    %v2364 = vunpack.c.h.b16 %v2157
    %v2365 = vunpack.c.l.b16 %v2158
    %v2366 = vunpack.c.l.b16 %v2159
    %v2367 = vunpack.c.h.b16 %v2159
    %v2368 = vunpack.c.l.b16 %v2160
    %v2369 = vunpack.c.l.b16 %v2161
    %v2370 = vunpack.c.h.b16 %v2161
    %v2371 = vunpack.c.l.b16 %v2162
    %v2372 = vunpack.c.l.b16 %v2163
    %v2373 = vunpack.c.h.b16 %v2163
    %v2374 = vunpack.c.l.b16 %v2164
    %v2375 = vunpack.c.l.b16 %v2165
    %v2376 = vunpack.c.h.b16 %v2165
    %v2377 = vunpack.c.l.b16 %v2166
    %v2378 = vunpack.c.l.b16 %v2167
    %v2379 = vunpack.c.h.b16 %v2167
    %v2380 = vunpack.c.l.b16 %v2168
    %v2381 = vunpack.c.l.b16 %v2169
    %v2382 = vunpack.c.h.b16 %v2169
    %v2383 = vunpack.c.l.b16 %v2170
    %v2384 = vunpack.c.l.b16 %v2171
    %v2385 = vunpack.c.h.b16 %v2171
    %v2386 = vunpack.c.l.b16 %v2172
    %v2387 = vunpack.c.l.b16 %v2173
    %v2388 = vunpack.c.h.b16 %v2173
    %v2389 = vunpack.c.l.b16 %v2174
    %v2390 = vunpack.c.l.b16 %v2175
    %v2391 = vunpack.c.h.b16 %v2175
    %v2392 = vunpack.c.l.b16 %v2176
    %v2393 = vunpack.c.l.b16 %v2177
    %v2394 = vunpack.c.h.b16 %v2177
    %v2395 = vunpack.c.l.b16 %v2178
    %v2396 = vunpack.c.l.b16 %v2179
    %v2397 = vunpack.c.h.b16 %v2179
    %v2398 = vunpack.c.l.b16 %v2180
    %v2399 = vunpack.c.l.b16 %v2181
    %v2400 = vunpack.c.h.b16 %v2181
    %v2401 = vunpack.c.l.b16 %v2182
    %v2402 = vunpack.c.l.b16 %v2183
    %v2403 = vunpack.c.h.b16 %v2183
    %v2404 = vunpack.c.l.b16 %v2184
    %v2405 = vunpack.c.l.b16 %v2185
    %v2406 = vunpack.c.h.b16 %v2185
    %v2407 = vunpack.c.l.b16 %v2186
    %v2408 = vunpack.c.l.b16 %v2187
    %v2409 = vunpack.c.h.b16 %v2187
    %v2410 = vunpack.c.l.b16 %v2188
    %v2411 = vunpack.c.l.b16 %v2189
    %v2412 = vunpack.c.h.b16 %v2189
    %v2413 = vunpack.c.l.b16 %v2190
    %v2414 = vunpack.c.l.b16 %v2191
    %v2415 = vunpack.c.h.b16 %v2191
    %v2416 = vunpack.c.l.b16 %v2192
    %v2417 = vunpack.c.l.b16 %v2193
    %v2418 = vunpack.c.h.b16 %v2193
    %v2419 = vunpack.c.l.b16 %v2194
    %v2420 = vunpack.c.l.b16 %v2195
    %v2421 = vunpack.c.h.b16 %v2195
    %v2422 = vunpack.c.l.b16 %v2196
    %v2423 = vunpack.c.l.b16 %v2197
    %v2424 = vunpack.c.h.b16 %v2197
    %v2425 = vunpack.c.l.b16 %v2198
    %v2426 = vunpack.c.l.b16 %v2199
    %v2427 = vunpack.c.h.b16 %v2199
    %v2428 = vunpack.c.l.b16 %v2200
    %v2429 = vunpack.c.l.b16 %v2201
    %v2430 = vunpack.c.h.b16 %v2201
    %v2431 = vunpack.c.l.b16 %v2202
    %v2432 = vunpack.c.l.b16 %v2203
    %v2433 = vunpack.c.h.b16 %v2203
    %v2434 = vunpack.c.l.b16 %v2204
    %v2435 = vunpack.c.l.b16 %v2205
    %v2436 = vunpack.c.h.b16 %v2205
    %v2437 = vunpack.c.l.b16 %v2206
    %v2438 = vunpack.c.l.b16 %v2207
    %v2439 = vunpack.c.h.b16 %v2207
    %v2440 = vunpack.c.l.b16 %v2208
    %v2441 = vunpack.c.l.b16 %v2209
    %v2442 = vunpack.c.h.b16 %v2209
    %v2443 = vunpack.c.l.b16 %v2210
    %v2444 = vunpack.c.l.b16 %v2211
    %v2445 = vunpack.c.h.b16 %v2211
    %v2446 = vunpack.c.l.b16 %v2212
    %v2447 = vunpack.c.l.b16 %v2213
    %v2448 = vunpack.c.h.b16 %v2213
    %v2449 = vunpack.c.l.b16 %v2214
    %v2450 = vunpack.c.l.b16 %v2215
    %v2451 = vunpack.c.h.b16 %v2215
    %v2452 = vunpack.c.l.b16 %v2216
    %v2453 = vunpack.c.l.b16 %v2217
    %v2454 = vunpack.c.h.b16 %v2217
    %v2455 = vunpack.c.l.b16 %v2218
    %v2456 = vunpack.c.l.b16 %v2219
    %v2457 = vunpack.c.h.b16 %v2219
    %v2458 = vunpack.c.l.b16 %v2220
    %v2459 = vunpack.c.l.b16 %v2221
    %v2460 = vunpack.c.h.b16 %v2221
    %v2461 = vunpack.c.l.b16 %v2222
    %v2462 = vunpack.c.l.b16 %v2223
    %v2463 = vunpack.c.h.b16 %v2223
    %v2464 = vunpack.c.l.b16 %v2224
    %v2465 = vunpack.c.l.b16 %v2225
    %v2466 = vunpack.c.h.b16 %v2225
    %v2467 = vunpack.c.l.b16 %v2226
    %v2468 = vunpack.c.l.b16 %v2227
    %v2469 = vunpack.c.h.b16 %v2227
    %v2470 = vunpack.c.l.b16 %v2228
    %v2471 = vunpack.c.l.b16 %v2229
    %v2472 = vunpack.c.h.b16 %v2229
    %v2473 = vunpack.c.l.b16 %v2230
    %v2474 = vunpack.c.l.b16 %v2231
    %v2475 = vunpack.c.h.b16 %v2231
    %v2476 = vunpack.c.l.b16 %v2232
    %v2477 = vunpack.c.l.b16 %v2233
    %v2478 = vunpack.c.h.b16 %v2233
    %v2479 = vunpack.c.l.b16 %v2234
    %v2480 = vunpack.c.l.b16 %v2235
    %v2481 = vunpack.c.h.b16 %v2235
    %v2482 = vunpack.c.l.b16 %v2236
    %v2483 = vunpack.c.l.b16 %v2237
    %v2484 = vunpack.c.h.b16 %v2237
    %v2485 = vunpack.c.l.b16 %v2238
    %v2486 = vunpack.c.l.b16 %v2239
    %v2487 = vunpack.c.h.b16 %v2239
    %v2488 = vunpack.c.l.b16 %v2240
    %v2489 = vpack.c.b16 %v2348, %v2345
    %v2490 = vpack.c.b16 %v2349, %v2346
    %v2491 = vpack.c.b16 %v2350, %v2347
    %v2492 = vpack.c.b16 %v2354, %v2351
    %v2493 = vpack.c.b16 %v2355, %v2352
    %v2494 = vpack.c.b16 %v2356, %v2353
    %v2495 = vpack.c.b16 %v2360, %v2357
    %v2496 = vpack.c.b16 %v2361, %v2358
    %v2497 = vpack.c.b16 %v2362, %v2359
    %v2498 = vpack.c.b16 %v2366, %v2363
    %v2499 = vpack.c.b16 %v2367, %v2364
    %v2500 = vpack.c.b16 %v2368, %v2365
    %v2501 = vpack.c.b16 %v2372, %v2369
    %v2502 = vpack.c.b16 %v2373, %v2370
    %v2503 = vpack.c.b16 %v2374, %v2371
    %v2504 = vpack.c.b16 %v2378, %v2375
    %v2505 = vpack.c.b16 %v2379, %v2376
    %v2506 = vpack.c.b16 %v2380, %v2377
    %v2507 = vpack.c.b16 %v2384, %v2381
    %v2508 = vpack.c.b16 %v2385, %v2382
    %v2509 = vpack.c.b16 %v2386, %v2383
    %v2510 = vpack.c.b16 %v2390, %v2387
    %v2511 = vpack.c.b16 %v2391, %v2388
    %v2512 = vpack.c.b16 %v2392, %v2389
    %v2513 = vpack.c.b16 %v2396, %v2393
    %v2514 = vpack.c.b16 %v2397, %v2394
    %v2515 = vpack.c.b16 %v2398, %v2395
    %v2516 = vpack.c.b16 %v2402, %v2399
    %v2517 = vpack.c.b16 %v2403, %v2400
    %v2518 = vpack.c.b16 %v2404, %v2401
    %v2519 = vpack.c.b16 %v2408, %v2405
    %v2520 = vpack.c.b16 %v2409, %v2406
    %v2521 = vpack.c.b16 %v2410, %v2407
    %v2522 = vpack.c.b16 %v2414, %v2411
    %v2523 = vpack.c.b16 %v2415, %v2412
    %v2524 = vpack.c.b16 %v2416, %v2413
    %v2525 = vpack.c.b16 %v2420, %v2417
    %v2526 = vpack.c.b16 %v2421, %v2418
    %v2527 = vpack.c.b16 %v2422, %v2419
    %v2528 = vpack.c.b16 %v2426, %v2423
    %v2529 = vpack.c.b16 %v2427, %v2424
    %v2530 = vpack.c.b16 %v2428, %v2425
    %v2531 = vpack.c.b16 %v2432, %v2429
    %v2532 = vpack.c.b16 %v2433, %v2430
    %v2533 = vpack.c.b16 %v2434, %v2431
    %v2534 = vpack.c.b16 %v2438, %v2435
    %v2535 = vpack.c.b16 %v2439, %v2436
    %v2536 = vpack.c.b16 %v2440, %v2437
    %v2537 = vpack.c.b16 %v2444, %v2441
    %v2538 = vpack.c.b16 %v2445, %v2442
    %v2539 = vpack.c.b16 %v2446, %v2443
    %v2540 = vpack.c.b16 %v2450, %v2447
    %v2541 = vpack.c.b16 %v2451, %v2448
    %v2542 = vpack.c.b16 %v2452, %v2449
    %v2543 = vpack.c.b16 %v2456, %v2453
    %v2544 = vpack.c.b16 %v2457, %v2454
    %v2545 = vpack.c.b16 %v2458, %v2455
    %v2546 = vpack.c.b16 %v2462, %v2459
    %v2547 = vpack.c.b16 %v2463, %v2460
    %v2548 = vpack.c.b16 %v2464, %v2461
    %v2549 = vpack.c.b16 %v2468, %v2465
    %v2550 = vpack.c.b16 %v2469, %v2466
    %v2551 = vpack.c.b16 %v2470, %v2467
    %v2552 = vpack.c.b16 %v2474, %v2471
    %v2553 = vpack.c.b16 %v2475, %v2472
    %v2554 = vpack.c.b16 %v2476, %v2473
    %v2555 = vpack.c.b16 %v2480, %v2477
    %v2556 = vpack.c.b16 %v2481, %v2478
    %v2557 = vpack.c.b16 %v2482, %v2479
    %v2558 = vpack.c.b16 %v2486, %v2483
    %v2559 = vpack.c.b16 %v2487, %v2484
    %v2560 = vpack.c.b16 %v2488, %v2485
    %2633 = vmatpush.bf16.msra.mxu0 %v2510
    %2634 = vmatpush.bf16.msra.mxu0 %v2507
    %2635 = vmatpush.bf16.msra.mxu0 %v2504
    %2636 = vmatpush.bf16.msra.mxu0 %v2501
    %2637 = vmatpush.bf16.msra.mxu0 %v2498
    %2638 = vmatpush.bf16.msra.mxu0 %v2495
    %2639 = vmatpush.bf16.msra.mxu0 %v2492
    %2640 = vmatpush.bf16.msra.mxu0 %v2489
    %2641 = vmatmul.bf16.gmra.mxu0 %v2142
    %v2642 = vpop.f32.mrf.mxu0
    %v2643 = vadd.f32 %v2243, %v2642
    %v2644 = vpop.f32.mrf.mxu0
    %2645 = vdwg.mxu0
    %2646 = vmatpush.bf16.msra.mxu0 %v2534
    %2647 = vmatpush.bf16.msra.mxu0 %v2531
    %2648 = vmatpush.bf16.msra.mxu0 %v2528
    %2649 = vmatpush.bf16.msra.mxu0 %v2525
    %2650 = vmatpush.bf16.msra.mxu0 %v2522
    %2651 = vmatpush.bf16.msra.mxu0 %v2519
    %2652 = vmatpush.bf16.msra.mxu0 %v2516
    %2653 = vmatpush.bf16.msra.mxu0 %v2513
    %2654 = vmatmul.bf16.gmra.mxu0 %v2143
    %v2655 = vpop.f32.mrf.mxu0
    %v2656 = vadd.f32 %v2643, %v2655
    %v2657 = vpop.f32.mrf.mxu0
    %2658 = vdwg.mxu0
    %2659 = vmatpush.bf16.msra.mxu0 %v2558
    %2660 = vmatpush.bf16.msra.mxu0 %v2555
    %2661 = vmatpush.bf16.msra.mxu0 %v2552
    %2662 = vmatpush.bf16.msra.mxu0 %v2549
    %2663 = vmatpush.bf16.msra.mxu0 %v2546
    %2664 = vmatpush.bf16.msra.mxu0 %v2543
    %2665 = vmatpush.bf16.msra.mxu0 %v2540
    %2666 = vmatpush.bf16.msra.mxu0 %v2537
    %2667 = vmatmul.bf16.gmra.mxu0 %v2144
    %v2668 = vpop.f32.mrf.mxu0
    %v2669 = vadd.f32 %v2656, %v2668
    %v2670 = vpop.f32.mrf.mxu0
    %2671 = vdwg.mxu0
    %2672 = vmatpush.bf16.msra.mxu0 %v2511
    %2673 = vmatpush.bf16.msra.mxu0 %v2508
    %2674 = vmatpush.bf16.msra.mxu0 %v2505
    %2675 = vmatpush.bf16.msra.mxu0 %v2502
    %2676 = vmatpush.bf16.msra.mxu0 %v2499
    %2677 = vmatpush.bf16.msra.mxu0 %v2496
    %2678 = vmatpush.bf16.msra.mxu0 %v2493
    %2679 = vmatpush.bf16.msra.mxu0 %v2490
    %2680 = vmatmul.bf16.gmra.mxu0 %v2142
    %v2681 = vpop.f32.mrf.mxu0
    %v2682 = vadd.f32 %v2244, %v2681
    %v2683 = vpop.f32.mrf.mxu0
    %2684 = vdwg.mxu0
    %2685 = vmatpush.bf16.msra.mxu0 %v2535
    %2686 = vmatpush.bf16.msra.mxu0 %v2532
    %2687 = vmatpush.bf16.msra.mxu0 %v2529
    %2688 = vmatpush.bf16.msra.mxu0 %v2526
    %2689 = vmatpush.bf16.msra.mxu0 %v2523
    %2690 = vmatpush.bf16.msra.mxu0 %v2520
    %2691 = vmatpush.bf16.msra.mxu0 %v2517
    %2692 = vmatpush.bf16.msra.mxu0 %v2514
    %2693 = vmatmul.bf16.gmra.mxu0 %v2143
    %v2694 = vpop.f32.mrf.mxu0
    %v2695 = vadd.f32 %v2682, %v2694
    %v2696 = vpop.f32.mrf.mxu0
    %2697 = vdwg.mxu0
    %2698 = vmatpush.bf16.msra.mxu0 %v2559
    %2699 = vmatpush.bf16.msra.mxu0 %v2556
    %2700 = vmatpush.bf16.msra.mxu0 %v2553
    %2701 = vmatpush.bf16.msra.mxu0 %v2550
    %2702 = vmatpush.bf16.msra.mxu0 %v2547
    %2703 = vmatpush.bf16.msra.mxu0 %v2544
    %2704 = vmatpush.bf16.msra.mxu0 %v2541
    %2705 = vmatpush.bf16.msra.mxu0 %v2538
    %2706 = vmatmul.bf16.gmra.mxu0 %v2144
    %v2707 = vpop.f32.mrf.mxu0
    %v2708 = vadd.f32 %v2695, %v2707
    %v2709 = vpop.f32.mrf.mxu0
    %2710 = vdwg.mxu0
    %2711 = vmatpush.bf16.msra.mxu0 %v2512
    %2712 = vmatpush.bf16.msra.mxu0 %v2509
    %2713 = vmatpush.bf16.msra.mxu0 %v2506
    %2714 = vmatpush.bf16.msra.mxu0 %v2503
    %2715 = vmatpush.bf16.msra.mxu0 %v2500
    %2716 = vmatpush.bf16.msra.mxu0 %v2497
    %2717 = vmatpush.bf16.msra.mxu0 %v2494
    %2718 = vmatpush.bf16.msra.mxu0 %v2491
    %2719 = vmatmul.bf16.gmra.mxu0 %v2142
    %v2720 = vpop.f32.mrf.mxu0
    %v2721 = vadd.f32 %v2245, %v2720
    %v2722 = vpop.f32.mrf.mxu0
    %2723 = vdwg.mxu0
    %2724 = vmatpush.bf16.msra.mxu0 %v2536
    %2725 = vmatpush.bf16.msra.mxu0 %v2533
    %2726 = vmatpush.bf16.msra.mxu0 %v2530
    %2727 = vmatpush.bf16.msra.mxu0 %v2527
    %2728 = vmatpush.bf16.msra.mxu0 %v2524
    %2729 = vmatpush.bf16.msra.mxu0 %v2521
    %2730 = vmatpush.bf16.msra.mxu0 %v2518
    %2731 = vmatpush.bf16.msra.mxu0 %v2515
    %2732 = vmatmul.bf16.gmra.mxu0 %v2143
    %v2733 = vpop.f32.mrf.mxu0
    %v2734 = vadd.f32 %v2721, %v2733
    %v2735 = vpop.f32.mrf.mxu0
    %2736 = vdwg.mxu0
    %2737 = vmatpush.bf16.msra.mxu0 %v2560
    %2738 = vmatpush.bf16.msra.mxu0 %v2557
    %2739 = vmatpush.bf16.msra.mxu0 %v2554
    %2740 = vmatpush.bf16.msra.mxu0 %v2551
    %2741 = vmatpush.bf16.msra.mxu0 %v2548
    %2742 = vmatpush.bf16.msra.mxu0 %v2545
    %2743 = vmatpush.bf16.msra.mxu0 %v2542
    %2744 = vmatpush.bf16.msra.mxu0 %v2539
    %2745 = vmatmul.bf16.gmra.mxu0 %v2144
    %v2746 = vpop.f32.mrf.mxu0
    %v2747 = vadd.f32 %v2734, %v2746
    %v2748 = vpop.f32.mrf.mxu0
    %2749 = vdwg.mxu0
    %v2750 = vtanh.pop %v2669
    %v2751 = vtanh.pop %v2708
    %v2752 = vtanh.pop %v2747
    %v2753 = vpack.c.bf16 %v2750, %v2750
    %v2754 = vpack.c.bf16 %v2751, %v2751
    %v2755 = vpack.c.bf16 %v2752, %v2752
    %v2756 = vld [vmem:[#allocation10] sm:$0xff]
    %v2757 = vld [vmem:[#allocation10 + $0x8] sm:$0xff]
    %v2758 = vld [vmem:[#allocation10 + $0x10] sm:$0xff]
    %v2759 = vld [vmem:[#allocation10 + $0x18] sm:$0xff]
    %v2760 = vld [vmem:[#allocation10 + $0x20] sm:$0xff]
    %v2761 = vld [vmem:[#allocation10 + $0x28] sm:$0xff]
    %v2762 = vld [vmem:[#allocation10 + $0x30] sm:$0xff]
    %v2763 = vld [vmem:[#allocation10 + $0x38] sm:$0xff]
    %v2764 = vld [vmem:[#allocation10 + $0x40] sm:$0xff]
    %v2765 = vld [vmem:[#allocation10 + $0x48] sm:$0xff]
    %v2766 = vld [vmem:[#allocation10 + $0x50] sm:$0xff]
    %v2767 = vld [vmem:[#allocation10 + $0x58] sm:$0xff]
    %v2768 = vld [vmem:[#allocation10 + $0x60] sm:$0xff]
    %v2769 = vld [vmem:[#allocation10 + $0x68] sm:$0xff]
    %v2770 = vld [vmem:[#allocation10 + $0x70] sm:$0xff]
    %v2771 = vld [vmem:[#allocation10 + $0x78] sm:$0xff]
    %v2772 = vld [vmem:[#allocation10 + $0x80] sm:$0xff]
    %v2773 = vld [vmem:[#allocation10 + $0x88] sm:$0xff]
    %v2774 = vld [vmem:[#allocation10 + $0x90] sm:$0xff]
    %v2775 = vld [vmem:[#allocation10 + $0x98] sm:$0xff]
    %v2776 = vld [vmem:[#allocation10 + $0xa0] sm:$0xff]
    %v2777 = vld [vmem:[#allocation10 + $0xa8] sm:$0xff]
    %v2778 = vld [vmem:[#allocation10 + $0xb0] sm:$0xff]
    %v2779 = vld [vmem:[#allocation10 + $0xb8] sm:$0xff]
    %v2780 = vld [vmem:[#allocation10 + $0xc0] sm:$0xff]
    %v2781 = vld [vmem:[#allocation10 + $0xc8] sm:$0xff]
    %v2782 = vld [vmem:[#allocation10 + $0xd0] sm:$0xff]
    %v2783 = vld [vmem:[#allocation10 + $0xd8] sm:$0xff]
    %v2784 = vld [vmem:[#allocation10 + $0xe0] sm:$0xff]
    %v2785 = vld [vmem:[#allocation10 + $0xe8] sm:$0xff]
    %v2786 = vld [vmem:[#allocation10 + $0xf0] sm:$0xff]
    %v2787 = vld [vmem:[#allocation10 + $0xf8] sm:$0xff]
    %v2788 = vld [vmem:[#allocation10 + $0x100] sm:$0xff]
    %v2789 = vld [vmem:[#allocation10 + $0x108] sm:$0xff]
    %v2790 = vld [vmem:[#allocation10 + $0x110] sm:$0xff]
    %v2791 = vld [vmem:[#allocation10 + $0x118] sm:$0xff]
    %v2792 = vld [vmem:[#allocation10 + $0x120] sm:$0xff]
    %v2793 = vld [vmem:[#allocation10 + $0x128] sm:$0xff]
    %v2794 = vld [vmem:[#allocation10 + $0x130] sm:$0xff]
    %v2795 = vld [vmem:[#allocation10 + $0x138] sm:$0xff]
    %v2796 = vld [vmem:[#allocation10 + $0x140] sm:$0xff]
    %v2797 = vld [vmem:[#allocation10 + $0x148] sm:$0xff]
    %v2798 = vld [vmem:[#allocation10 + $0x150] sm:$0xff]
    %v2799 = vld [vmem:[#allocation10 + $0x158] sm:$0xff]
    %v2800 = vld [vmem:[#allocation10 + $0x160] sm:$0xff]
    %v2801 = vld [vmem:[#allocation10 + $0x168] sm:$0xff]
    %v2802 = vld [vmem:[#allocation10 + $0x170] sm:$0xff]
    %v2803 = vld [vmem:[#allocation10 + $0x178] sm:$0xff]
    %v2804 = vld [vmem:[%s6] sm:$0x3]
    %v2806 = vperm.slane %v2804, 0
    %v2807 = vperm.slane %v2804, 1
    %v2858 = vunpack.c.l.b16 %v2756
    %v2859 = vunpack.c.h.b16 %v2756
    %v2860 = vunpack.c.l.b16 %v2757
    %v2861 = vunpack.c.h.b16 %v2757
    %v2862 = vunpack.c.l.b16 %v2758
    %v2863 = vunpack.c.h.b16 %v2758
    %v2864 = vunpack.c.l.b16 %v2759
    %v2865 = vunpack.c.h.b16 %v2759
    %v2866 = vunpack.c.l.b16 %v2760
    %v2867 = vunpack.c.h.b16 %v2760
    %v2868 = vunpack.c.l.b16 %v2761
    %v2869 = vunpack.c.h.b16 %v2761
    %v2870 = vunpack.c.l.b16 %v2762
    %v2871 = vunpack.c.h.b16 %v2762
    %v2872 = vunpack.c.l.b16 %v2763
    %v2873 = vunpack.c.h.b16 %v2763
    %v2874 = vunpack.c.l.b16 %v2764
    %v2875 = vunpack.c.h.b16 %v2764
    %v2876 = vunpack.c.l.b16 %v2765
    %v2877 = vunpack.c.h.b16 %v2765
    %v2878 = vunpack.c.l.b16 %v2766
    %v2879 = vunpack.c.h.b16 %v2766
    %v2880 = vunpack.c.l.b16 %v2767
    %v2881 = vunpack.c.h.b16 %v2767
    %v2882 = vunpack.c.l.b16 %v2768
    %v2883 = vunpack.c.h.b16 %v2768
    %v2884 = vunpack.c.l.b16 %v2769
    %v2885 = vunpack.c.h.b16 %v2769
    %v2886 = vunpack.c.l.b16 %v2770
    %v2887 = vunpack.c.h.b16 %v2770
    %v2888 = vunpack.c.l.b16 %v2771
    %v2889 = vunpack.c.h.b16 %v2771
    %v2890 = vunpack.c.l.b16 %v2772
    %v2891 = vunpack.c.h.b16 %v2772
    %v2892 = vunpack.c.l.b16 %v2773
    %v2893 = vunpack.c.h.b16 %v2773
    %v2894 = vunpack.c.l.b16 %v2774
    %v2895 = vunpack.c.h.b16 %v2774
    %v2896 = vunpack.c.l.b16 %v2775
    %v2897 = vunpack.c.h.b16 %v2775
    %v2898 = vunpack.c.l.b16 %v2776
    %v2899 = vunpack.c.h.b16 %v2776
    %v2900 = vunpack.c.l.b16 %v2777
    %v2901 = vunpack.c.h.b16 %v2777
    %v2902 = vunpack.c.l.b16 %v2778
    %v2903 = vunpack.c.h.b16 %v2778
    %v2904 = vunpack.c.l.b16 %v2779
    %v2905 = vunpack.c.h.b16 %v2779
    %v2906 = vunpack.c.l.b16 %v2780
    %v2907 = vunpack.c.h.b16 %v2780
    %v2908 = vunpack.c.l.b16 %v2781
    %v2909 = vunpack.c.h.b16 %v2781
    %v2910 = vunpack.c.l.b16 %v2782
    %v2911 = vunpack.c.h.b16 %v2782
    %v2912 = vunpack.c.l.b16 %v2783
    %v2913 = vunpack.c.h.b16 %v2783
    %v2914 = vunpack.c.l.b16 %v2784
    %v2915 = vunpack.c.h.b16 %v2784
    %v2916 = vunpack.c.l.b16 %v2785
    %v2917 = vunpack.c.h.b16 %v2785
    %v2918 = vunpack.c.l.b16 %v2786
    %v2919 = vunpack.c.h.b16 %v2786
    %v2920 = vunpack.c.l.b16 %v2787
    %v2921 = vunpack.c.h.b16 %v2787
    %v2922 = vunpack.c.l.b16 %v2788
    %v2923 = vunpack.c.h.b16 %v2788
    %v2924 = vunpack.c.l.b16 %v2789
    %v2925 = vunpack.c.h.b16 %v2789
    %v2926 = vunpack.c.l.b16 %v2790
    %v2927 = vunpack.c.h.b16 %v2790
    %v2928 = vunpack.c.l.b16 %v2791
    %v2929 = vunpack.c.h.b16 %v2791
    %v2930 = vunpack.c.l.b16 %v2792
    %v2931 = vunpack.c.h.b16 %v2792
    %v2932 = vunpack.c.l.b16 %v2793
    %v2933 = vunpack.c.h.b16 %v2793
    %v2934 = vunpack.c.l.b16 %v2794
    %v2935 = vunpack.c.h.b16 %v2794
    %v2936 = vunpack.c.l.b16 %v2795
    %v2937 = vunpack.c.h.b16 %v2795
    %v2938 = vunpack.c.l.b16 %v2796
    %v2939 = vunpack.c.h.b16 %v2796
    %v2940 = vunpack.c.l.b16 %v2797
    %v2941 = vunpack.c.h.b16 %v2797
    %v2942 = vunpack.c.l.b16 %v2798
    %v2943 = vunpack.c.h.b16 %v2798
    %v2944 = vunpack.c.l.b16 %v2799
    %v2945 = vunpack.c.h.b16 %v2799
    %v2946 = vunpack.c.l.b16 %v2800
    %v2947 = vunpack.c.h.b16 %v2800
    %v2948 = vunpack.c.l.b16 %v2801
    %v2949 = vunpack.c.h.b16 %v2801
    %v2950 = vunpack.c.l.b16 %v2802
    %v2951 = vunpack.c.h.b16 %v2802
    %v2952 = vunpack.c.l.b16 %v2803
    %v2953 = vunpack.c.h.b16 %v2803
    %v2954 = vpack.c.b16 %v2860, %v2858
    %v2955 = vpack.c.b16 %v2861, %v2859
    %v2956 = vpack.c.b16 %v2864, %v2862
    %v2957 = vpack.c.b16 %v2865, %v2863
    %v2958 = vpack.c.b16 %v2868, %v2866
    %v2959 = vpack.c.b16 %v2869, %v2867
    %v2960 = vpack.c.b16 %v2872, %v2870
    %v2961 = vpack.c.b16 %v2873, %v2871
    %v2962 = vpack.c.b16 %v2876, %v2874
    %v2963 = vpack.c.b16 %v2877, %v2875
    %v2964 = vpack.c.b16 %v2880, %v2878
    %v2965 = vpack.c.b16 %v2881, %v2879
    %v2966 = vpack.c.b16 %v2884, %v2882
    %v2967 = vpack.c.b16 %v2885, %v2883
    %v2968 = vpack.c.b16 %v2888, %v2886
    %v2969 = vpack.c.b16 %v2889, %v2887
    %v2970 = vpack.c.b16 %v2892, %v2890
    %v2971 = vpack.c.b16 %v2893, %v2891
    %v2972 = vpack.c.b16 %v2896, %v2894
    %v2973 = vpack.c.b16 %v2897, %v2895
    %v2974 = vpack.c.b16 %v2900, %v2898
    %v2975 = vpack.c.b16 %v2901, %v2899
    %v2976 = vpack.c.b16 %v2904, %v2902
    %v2977 = vpack.c.b16 %v2905, %v2903
    %v2978 = vpack.c.b16 %v2908, %v2906
    %v2979 = vpack.c.b16 %v2909, %v2907
    %v2980 = vpack.c.b16 %v2912, %v2910
    %v2981 = vpack.c.b16 %v2913, %v2911
    %v2982 = vpack.c.b16 %v2916, %v2914
    %v2983 = vpack.c.b16 %v2917, %v2915
    %v2984 = vpack.c.b16 %v2920, %v2918
    %v2985 = vpack.c.b16 %v2921, %v2919
    %v2986 = vpack.c.b16 %v2924, %v2922
    %v2987 = vpack.c.b16 %v2925, %v2923
    %v2988 = vpack.c.b16 %v2928, %v2926
    %v2989 = vpack.c.b16 %v2929, %v2927
    %v2990 = vpack.c.b16 %v2932, %v2930
    %v2991 = vpack.c.b16 %v2933, %v2931
    %v2992 = vpack.c.b16 %v2936, %v2934
    %v2993 = vpack.c.b16 %v2937, %v2935
    %v2994 = vpack.c.b16 %v2940, %v2938
    %v2995 = vpack.c.b16 %v2941, %v2939
    %v2996 = vpack.c.b16 %v2944, %v2942
    %v2997 = vpack.c.b16 %v2945, %v2943
    %v2998 = vpack.c.b16 %v2948, %v2946
    %v2999 = vpack.c.b16 %v2949, %v2947
    %v3000 = vpack.c.b16 %v2952, %v2950
    %v3001 = vpack.c.b16 %v2953, %v2951
    %3050 = vmatpush.bf16.msra.mxu0 %v2968
    %3051 = vmatpush.bf16.msra.mxu0 %v2966
    %3052 = vmatpush.bf16.msra.mxu0 %v2964
    %3053 = vmatpush.bf16.msra.mxu0 %v2962
    %3054 = vmatpush.bf16.msra.mxu0 %v2960
    %3055 = vmatpush.bf16.msra.mxu0 %v2958
    %3056 = vmatpush.bf16.msra.mxu0 %v2956
    %3057 = vmatpush.bf16.msra.mxu0 %v2954
    %3058 = vmatmul.bf16.gmra.mxu0 %v2753
    %v3059 = vpop.f32.mrf.mxu0
    %v3060 = vadd.f32 %v2806, %v3059
    %v3061 = vpop.f32.mrf.mxu0
    %3062 = vdwg.mxu0
    %3063 = vmatpush.bf16.msra.mxu0 %v2984
    %3064 = vmatpush.bf16.msra.mxu0 %v2982
    %3065 = vmatpush.bf16.msra.mxu0 %v2980
    %3066 = vmatpush.bf16.msra.mxu0 %v2978
    %3067 = vmatpush.bf16.msra.mxu0 %v2976
    %3068 = vmatpush.bf16.msra.mxu0 %v2974
    %3069 = vmatpush.bf16.msra.mxu0 %v2972
    %3070 = vmatpush.bf16.msra.mxu0 %v2970
    %3071 = vmatmul.bf16.gmra.mxu0 %v2754
    %v3072 = vpop.f32.mrf.mxu0
    %v3073 = vadd.f32 %v3060, %v3072
    %v3074 = vpop.f32.mrf.mxu0
    %3075 = vdwg.mxu0
    %3076 = vmatpush.bf16.msra.mxu0 %v3000
    %3077 = vmatpush.bf16.msra.mxu0 %v2998
    %3078 = vmatpush.bf16.msra.mxu0 %v2996
    %3079 = vmatpush.bf16.msra.mxu0 %v2994
    %3080 = vmatpush.bf16.msra.mxu0 %v2992
    %3081 = vmatpush.bf16.msra.mxu0 %v2990
    %3082 = vmatpush.bf16.msra.mxu0 %v2988
    %3083 = vmatpush.bf16.msra.mxu0 %v2986
    %3084 = vmatmul.bf16.gmra.mxu0 %v2755
    %v3085 = vpop.f32.mrf.mxu0
    %v3086 = vadd.f32 %v3073, %v3085
    %v3087 = vpop.f32.mrf.mxu0
    %3088 = vdwg.mxu0
    %3089 = vmatpush.bf16.msra.mxu0 %v2969
    %3090 = vmatpush.bf16.msra.mxu0 %v2967
    %3091 = vmatpush.bf16.msra.mxu0 %v2965
    %3092 = vmatpush.bf16.msra.mxu0 %v2963
    %3093 = vmatpush.bf16.msra.mxu0 %v2961
    %3094 = vmatpush.bf16.msra.mxu0 %v2959
    %3095 = vmatpush.bf16.msra.mxu0 %v2957
    %3096 = vmatpush.bf16.msra.mxu0 %v2955
    %3097 = vmatmul.bf16.gmra.mxu0 %v2753
    %v3098 = vpop.f32.mrf.mxu0
    %v3099 = vadd.f32 %v2807, %v3098
    %v3100 = vpop.f32.mrf.mxu0
    %3101 = vdwg.mxu0
    %3102 = vmatpush.bf16.msra.mxu0 %v2985
    %3103 = vmatpush.bf16.msra.mxu0 %v2983
    %3104 = vmatpush.bf16.msra.mxu0 %v2981
    %3105 = vmatpush.bf16.msra.mxu0 %v2979
    %3106 = vmatpush.bf16.msra.mxu0 %v2977
    %3107 = vmatpush.bf16.msra.mxu0 %v2975
    %3108 = vmatpush.bf16.msra.mxu0 %v2973
    %3109 = vmatpush.bf16.msra.mxu0 %v2971
    %3110 = vmatmul.bf16.gmra.mxu0 %v2754
    %v3111 = vpop.f32.mrf.mxu0
    %v3112 = vadd.f32 %v3099, %v3111
    %v3113 = vpop.f32.mrf.mxu0
    %3114 = vdwg.mxu0
    %3115 = vmatpush.bf16.msra.mxu0 %v3001
    %3116 = vmatpush.bf16.msra.mxu0 %v2999
    %3117 = vmatpush.bf16.msra.mxu0 %v2997
    %3118 = vmatpush.bf16.msra.mxu0 %v2995
    %3119 = vmatpush.bf16.msra.mxu0 %v2993
    %3120 = vmatpush.bf16.msra.mxu0 %v2991
    %3121 = vmatpush.bf16.msra.mxu0 %v2989
    %3122 = vmatpush.bf16.msra.mxu0 %v2987
    %3123 = vmatmul.bf16.gmra.mxu0 %v2755
    %v3124 = vpop.f32.mrf.mxu0
    %v3125 = vadd.f32 %v3112, %v3124
    %v3126 = vpop.f32.mrf.mxu0
    %3127 = vdwg.mxu0
    %v3128 = vmax.f32 %v3086, %v3125
    %3129 = vmax.xlane.f32.xlu0 %v3128
    %v3130 = vpop.xlane.xlu0 %3129
    %v3131 = vsub.f32 %v3086, %v3130
    %v3132 = vsub.f32 %v3125, %v3130
    %v3133 = vmul.f32 %v3131, 1.442695
    %v3134 = vpow.pop %v3133
    %v3135 = vmul.f32 %v3132, 1.442695
    %v3136 = vpow.pop %v3135
    %v3137 = vadd.f32 %v3134, %v3136
    %3138 = vadd.xlane.f32.xlu0 %v3137
    %v3139 = vpop.xlane.xlu0 %3138
    %v3140 = vlog2.pop %v3139
    %v3141 = vmul.f32 %v3140, 0.6931472
    %v3142 = vsub.f32 %v3131, %v3141
    %v3143 = vsub.f32 %v3132, %v3141
    %3144 = vst [vmem:[#allocation11] sm:$0xff] %v3142
    %3145 = vst [vmem:[#allocation11 + $0x8] sm:$0xff] %v3143
    // Predicated region
    $region50: #{tpu_custom_call.1} parent=1 // pred_check
      _
    $region51: #{tpu_custom_call.1} parent=1 // pred_check_branch
      %3147 = sbr.rel (0) target = $region53
    $region52: #{tpu_custom_call.1} parent=1 // pred_region
      %3149 = vsyncadd [#allocation4], 0
      %s3151 = sshll.u32 [#allocation11], 4
      %s3152 = int_to_ptr.vmem [resolvable:$true] %s3151
      %s3153 = sshll.u32 %s7, 4
      %s3154 = int_to_ptr.hbm [resolvable:$true] %s3153
      %3156 = dma.vmem_to_hbm [thread:$0]  %s3152, 256, %s3154, [#allocation4]
    $region53: #{tpu_custom_call.1} parent=1 // pred_fallthru
      _
    // Predicated region
    $region54: #{tpu_custom_call.1} parent=1 // pred_check
      _
    $region55: #{tpu_custom_call.1} parent=1 // pred_check_branch
      %3158 = sbr.rel (0) target = $region57
    $region56: #{tpu_custom_call.1} parent=1 // pred_region
      %3160 = dma.done [#allocation4], 256
    $region57: #{tpu_custom_call.1} parent=1 // pred_fallthru
      _
    %3161 = vsyncpa [#allocation3], 1
    %3162 = vsyncpa [#allocation6], 1
    %3163 = vsyncpa [#allocation9], 1
    %3164 = vsyncpa [#allocation4], 1

</llo_original>
